<compile_context>
chip_gen: v5e
topology: v5e:2x2
jax: 0.10.0
libtpu: 0.0.40
codegen_flags: <defaults>
</compile_context>

<pallas_src>
import functools

import jax
import jax.numpy as jnp
from jax import lax
from jax.experimental import pallas as pl
from jax.experimental.pallas import tpu as pltpu

# Pad feature dims to this multiple.
# TODO(synk): use 256-multiples on v6e/v7x (2x256^2 MXU) once real hidden sizes
# (>=256) are used; 128 keeps v5e's 128^2 MXU saturated and is exact here.
LANE = 128


def _round_up(x, m):
    return ((x + m - 1) // m) * m


def _pad2d(x, rows, cols):
    r, c = x.shape
    return jnp.pad(x, ((0, rows - r), (0, cols - c)))


def _pick_block(bp):
    """Square logits tile size for the loss head."""
    for blk in (256, 128):
        if bp % blk == 0:
            return blk
    return bp  # small batch: single full-extent block


def _vmem_limit(block_bytes):
    # double-buffered pipeline blocks + scratch/headroom; clamp below v7x's
    # 64 MiB physical VMEM.
    return int(min(48 << 20, max(2 * block_bytes + (4 << 20), 8 << 20)))


# ------------------------- encode kernel (grid = (2,)) ----------------------
# One grid step per modality (0 = vision, 1 = text): encoder linear ->
# projection head -> L2-normalize, all on zero-padded (exact) tiles.

def _encode_kernel(x_ref, w_enc_ref, w_proj_ref, feat_ref):
    f32 = jnp.float32
    # encoder linear (bf16 operands, f32 accumulation on the MXU)
    h = jnp.dot(x_ref[...], w_enc_ref[...], preferred_element_type=f32)
    # projection head (nn.Linear, bias=False)
    p = jnp.dot(h.astype(jnp.bfloat16), w_proj_ref[...],
                preferred_element_type=f32)
    # L2-normalize (matches F.normalize eps=1e-12); rsqrt -> EUP slot.
    ss = jnp.sum(p * p, axis=-1, keepdims=True)
    feat_ref[...] = p * lax.rsqrt(jnp.maximum(ss, 1e-24))


def clip_encode_call(x_stack, w_enc_stack, w_proj_stack):
    _, bp, kp = x_stack.shape
    hp = w_enc_stack.shape[2]
    pp = w_proj_stack.shape[2]
    block_bytes = 2 * (bp * kp + kp * hp + hp * pp) + 4 * bp * pp
    return pl.pallas_call(
        _encode_kernel,
        out_shape=jax.ShapeDtypeStruct((2, bp, pp), jnp.float32),
        grid=(2,),
        in_specs=[
            pl.BlockSpec((pl.Squeezed(), bp, kp), lambda m: (m, 0, 0)),
            pl.BlockSpec((pl.Squeezed(), kp, hp), lambda m: (m, 0, 0)),
            pl.BlockSpec((pl.Squeezed(), hp, pp), lambda m: (m, 0, 0)),
        ],
        out_specs=pl.BlockSpec((pl.Squeezed(), bp, pp), lambda m: (m, 0, 0)),
        compiler_params=pltpu.CompilerParams(
            dimension_semantics=("parallel",),      # v7x: one modality per TC
            vmem_limit_bytes=_vmem_limit(block_bytes)),
    )(x_stack, w_enc_stack, w_proj_stack)


# --------------------- loss head kernel (grid = (I, J)) ---------------------
# Single-pass logits tiles: each (tm, tn) tile feeds BOTH the row (image->text)
# and column (text->image) online logsumexp, plus the diagonal extraction.

def _loss_kernel(temp_ref, img_ref, txt_ref,
                 logits_ref, loss_ref,
                 m_row, l_row, diag_row,
                 m_col, l_col, diag_col,
                 racc_ref, cacc_ref,
                 *, batch, tm, tn, n_row, n_col, padded):
    f32 = jnp.float32
    i = pl.program_id(0)
    j = pl.program_id(1)
    neg = jnp.float32(-1e30)

    @pl.when(jnp.logical_and(i == 0, j == 0))
    def _():
        racc_ref[...] = jnp.zeros_like(racc_ref)
        cacc_ref[...] = jnp.zeros_like(cacc_ref)
        loss_ref[...] = jnp.zeros_like(loss_ref)

    @pl.when(j == 0)                              # new row block
    def _():
        m_row[...] = jnp.full_like(m_row, -jnp.inf)
        l_row[...] = jnp.zeros_like(l_row)
        diag_row[...] = jnp.zeros_like(diag_row)

    @pl.when(i == 0)                              # first visit of col block j
    def _():
        m_col[j] = jnp.full((1, tn), -jnp.inf, f32)
        l_col[j] = jnp.zeros((1, tn), f32)
        diag_col[j] = jnp.zeros((1, tn), f32)

    # logits tile: bf16 MXU matmul (f32 accumulation), temperature scale in f32
    # AFTER the matmul so large exp(temperature) never compresses bf16 mantissa.
    scale = jnp.exp(temp_ref[0])
    tile = lax.dot_general(
        img_ref[...].astype(jnp.bfloat16), txt_ref[...].astype(jnp.bfloat16),
        (((1,), (1,)), ((), ())), preferred_element_type=f32) * scale
    logits_ref[...] = tile

    # mask padded rows/cols (compiled in only when the batch is padded)
    if padded:
        row_g = i * tm + lax.broadcasted_iota(jnp.int32, (tm, tn), 0)
        col_g = j * tn + lax.broadcasted_iota(jnp.int32, (tm, tn), 1)
        lm = jnp.where(jnp.logical_and(row_g < batch, col_g < batch), tile, neg)
    else:
        lm = tile

    # correct-class logits: extracted from the stored tile itself so the loss
    # uses exactly the same (bf16-rounded, scaled) values as the logits output.
    @pl.when(i == j)
    def _():
        eq = (lax.broadcasted_iota(jnp.int32, (tm, tn), 0)
              == lax.broadcasted_iota(jnp.int32, (tm, tn), 1))
        d = jnp.where(eq, tile, 0.0)
        diag_row[...] = jnp.sum(d, axis=1, keepdims=True)   # (tm, 1)
        diag_col[j] = jnp.sum(d, axis=0, keepdims=True)     # (1, tn)

    # online logsumexp, image -> text (rows; lane reductions)
    m_prev = m_row[...]
    m_new = jnp.maximum(m_prev, jnp.max(lm, axis=1, keepdims=True))
    l_row[...] = (jnp.exp(m_prev - m_new) * l_row[...]
                  + jnp.sum(jnp.exp(lm - m_new), axis=1, keepdims=True))
    m_row[...] = m_new

    # online logsumexp, text -> image (columns; sublane reductions, same tile)
    mc_prev = m_col[j]
    mc_new = jnp.maximum(mc_prev, jnp.max(lm, axis=0, keepdims=True))
    l_col[j] = (jnp.exp(mc_prev - mc_new) * l_col[j]
                + jnp.sum(jnp.exp(lm - mc_new), axis=0, keepdims=True))
    m_col[j] = mc_new

    # finalize image loss contribution of this row block
    @pl.when(j == n_col - 1)
    def _():
        per_row = m_row[...] + jnp.log(l_row[...]) - diag_row[...]
        if padded:
            rvalid = (i * tm + lax.broadcasted_iota(jnp.int32, (tm, 1), 0)) < batch
            per_row = jnp.where(rvalid, per_row, 0.0)
        racc_ref[...] += jnp.sum(per_row, axis=0, keepdims=True)   # (1, 1)

    # finalize text loss contribution of this column block
    @pl.when(i == n_row - 1)
    def _():
        per_col = m_col[j] + jnp.log(l_col[j]) - diag_col[j]
        if padded:
            cvalid = (j * tn + lax.broadcasted_iota(jnp.int32, (1, tn), 1)) < batch
            per_col = jnp.where(cvalid, per_col, 0.0)
        cacc_ref[...] += jnp.sum(per_col, axis=1, keepdims=True)   # (1, 1)

    # pack [loss_img, loss_txt, loss] into one lane-dense (1, 128) store
    @pl.when(jnp.logical_and(i == n_row - 1, j == n_col - 1))
    def _():
        inv_b = 1.0 / float(batch)
        loss_img = racc_ref[...] * inv_b
        loss_txt = cacc_ref[...] * inv_b
        loss = 0.5 * (loss_img + loss_txt)
        lane = lax.broadcasted_iota(jnp.int32, (1, loss_ref.shape[1]), 1)
        loss_ref[...] = (jnp.where(lane == 0, loss_img, 0.0)
                         + jnp.where(lane == 1, loss_txt, 0.0)
                         + jnp.where(lane == 2, loss, 0.0))


def clip_loss_call(temperature, feats, *, batch):
    """Gridded contrastive loss head over (row_block, col_block) logits tiles."""
    _, bp, pp = feats.shape
    tm = tn = _pick_block(bp)
    n_row, n_col = bp // tm, bp // tn
    kernel = functools.partial(
        _loss_kernel, batch=batch, tm=tm, tn=tn, n_row=n_row, n_col=n_col,
        padded=(bp != batch))
    block_bytes = 4 * (tm * pp + tn * pp + tm * tn + 128)
    return pl.pallas_call(
        kernel,
        out_shape=(
            jax.ShapeDtypeStruct((bp, bp), jnp.float32),   # logits (padded)
            jax.ShapeDtypeStruct((1, 128), jnp.float32),   # packed losses
        ),
        grid=(n_row, n_col),
        in_specs=[
            pl.BlockSpec(memory_space=pltpu.MemorySpace.SMEM),           # temp
            pl.BlockSpec((pl.Squeezed(), tm, pp), lambda i, j: (0, i, 0)),  # img rows
            pl.BlockSpec((pl.Squeezed(), tn, pp), lambda i, j: (1, j, 0)),  # txt cols
        ],
        out_specs=(
            pl.BlockSpec((tm, tn), lambda i, j: (i, j)),
            pl.BlockSpec((1, 128), lambda i, j: (0, 0)),
        ),
        scratch_shapes=[
            pltpu.VMEM((tm, 1), jnp.float32),        # m_row
            pltpu.VMEM((tm, 1), jnp.float32),        # l_row
            pltpu.VMEM((tm, 1), jnp.float32),        # diag_row
            pltpu.VMEM((n_col, 1, tn), jnp.float32),  # m_col
            pltpu.VMEM((n_col, 1, tn), jnp.float32),  # l_col
            pltpu.VMEM((n_col, 1, tn), jnp.float32),  # diag_col
            pltpu.VMEM((1, 1), jnp.float32),         # row (image) loss acc
            pltpu.VMEM((1, 1), jnp.float32),         # col (text) loss acc
        ],
        compiler_params=pltpu.CompilerParams(
            # Column stats accumulate across row blocks in scratch, so both
            # axes must be "arbitrary" (single-pass tiles <-> no duplicate
            # transposed matmul); v7x 2-TC parallelism lives in the encode call.
            dimension_semantics=("arbitrary", "arbitrary"),
            vmem_limit_bytes=_vmem_limit(block_bytes)),
    )(temperature, feats, feats)


# ----------------------------- CLIP model -----------------------------------

class CLIPPallas:
    """Synthetic CLIP: tiny vision/text encoders + Pallas projection & loss."""

    def __init__(self, key, *, in_channels, vocab_size, embed_dim,
                 vision_encoder_hidden_dim, text_encoder_hidden_dim,
                 hidden_dim=32):
        ks = jax.random.split(key, 5)
        scale = 0.02
        self.hidden_dim = hidden_dim
        # synthetic "vision_encoder": global-avg-pool + linear (C -> V_hid)
        self.w_vis_enc = scale * jax.random.normal(
            ks[0], (in_channels, vision_encoder_hidden_dim), jnp.float32)
        # synthetic "text_encoder": embedding mean-pool + linear (E -> T_hid)
        self.embed = scale * jax.random.normal(
            ks[1], (vocab_size, embed_dim), jnp.float32)
        self.w_txt_enc = scale * jax.random.normal(
            ks[2], (embed_dim, text_encoder_hidden_dim), jnp.float32)
        # CLIP projection heads (nn.Linear, bias=False), stored as [Din, Dout]
        self.w_vision_proj = scale * jax.random.normal(
            ks[3], (vision_encoder_hidden_dim, hidden_dim), jnp.float32)
        self.w_text_proj = scale * jax.random.normal(
            ks[4], (text_encoder_hidden_dim, hidden_dim), jnp.float32)
        # temperature parameter (scalar, init 1.0), kept as (1,) for SMEM
        self.temperature = jnp.ones((1,), jnp.float32)

        # Pad + bf16-cast the weights ONCE (not per forward) and stack both
        # modalities so the encode kernel can run them on a size-2 parallel grid.
        kp = max(_round_up(in_channels, LANE), _round_up(embed_dim, LANE))
        hp = max(_round_up(vision_encoder_hidden_dim, LANE),
                 _round_up(text_encoder_hidden_dim, LANE))
        pp = _round_up(hidden_dim, LANE)
        self._kp, self._hp, self._pp = kp, hp, pp
        self.w_enc_stack = jnp.stack([
            _pad2d(self.w_vis_enc, kp, hp),
            _pad2d(self.w_txt_enc, kp, hp)]).astype(jnp.bfloat16)
        self.w_proj_stack = jnp.stack([
            _pad2d(self.w_vision_proj, hp, pp),
            _pad2d(self.w_text_proj, hp, pp)]).astype(jnp.bfloat16)

    def __call__(self, image, text):
        b = image.shape[0]
        # bf16 sublane tile is (16, 128); at real batches align to MXU height.
        bp = _round_up(b, 16) if b <= 128 else _round_up(b, 128)
        proj = self.hidden_dim

        # encoder front-ends with no matmul (pool / embedding gather) stay in XLA
        pooled_img = jnp.mean(image, axis=(2, 3))                           # [B, C]
        pooled_txt = jnp.mean(jnp.take(self.embed, text, axis=0), axis=1)   # [B, E]

        x_stack = jnp.stack([
            _pad2d(pooled_img, bp, self._kp),
            _pad2d(pooled_txt, bp, self._kp)]).astype(jnp.bfloat16)

        feats = clip_encode_call(x_stack, self.w_enc_stack, self.w_proj_stack)
        logits_p, losses = clip_loss_call(self.temperature, feats, batch=b)

        return {
            "logits": logits_p[:b, :b],
            "image_features": feats[0, :b, :proj],
            "text_features": feats[1, :b, :proj],
            "loss_img": losses[0, 0],
            "loss_txt": losses[0, 1],
            "loss": losses[0, 2],
        }


# ----------------------------- pure-JAX reference ---------------------------

def clip_reference(model, image, text):
    pooled_img = jnp.mean(image, axis=(2, 3))
    pooled_txt = jnp.mean(jnp.take(model.embed, text, axis=0), axis=1)

    def norm(x):
        return x / jnp.maximum(jnp.linalg.norm(x, axis=-1, keepdims=True), 1e-12)

    img = norm((pooled_img @ model.w_vis_enc) @ model.w_vision_proj)
    txt = norm((pooled_txt @ model.w_txt_enc) @ model.w_text_proj)
    logits = img @ txt.T * jnp.exp(model.temperature[0])
    diag = jnp.diag(logits)
    loss_img = jnp.mean(jax.nn.logsumexp(logits, axis=1) - diag)
    loss_txt = jnp.mean(jax.nn.logsumexp(logits, axis=0) - diag)
    return {"logits": logits, "image_features": img, "text_features": txt,
            "loss_img": loss_img, "loss_txt": loss_txt,
            "loss": 0.5 * (loss_img + loss_txt)}


# ----------------------------- main ------------------------------------------

if __name__ == "__main__":
    key = jax.random.PRNGKey(0)
    k_img, k_txt, k_params = jax.random.split(key, 3)

    B, C, H, W = 4, 4, 16, 16
    S, VOCAB, EMB = 8, 32, 16
    VIS_HID, TXT_HID, PROJ = 32, 24, 32

    image = jax.random.normal(k_img, (B, C, H, W), jnp.float32)
    text = jax.random.randint(k_txt, (B, S), 0, VOCAB, jnp.int32)

    model = CLIPPallas(
        k_params,
        in_channels=C, vocab_size=VOCAB, embed_dim=EMB,
        vision_encoder_hidden_dim=VIS_HID,
        text_encoder_hidden_dim=TXT_HID,
        hidden_dim=PROJ,
    )

    forward = jax.jit(lambda im, tx: model(im, tx))
    out = forward(image, text)
    jax.block_until_ready(out)

    # shape / finiteness sanity
    assert out["logits"].shape == (B, B)
    assert out["image_features"].shape == (B, PROJ)
    assert out["text_features"].shape == (B, PROJ)
    assert bool(jnp.isfinite(out["loss"]))

    # numerical sanity vs pure-f32 JAX reference (bf16 MXU operands -> loose tol)
    ref = clip_reference(model, image, text)
    assert bool(jnp.allclose(out["logits"], ref["logits"], atol=5e-2, rtol=5e-2))
    assert bool(jnp.allclose(out["image_features"], ref["image_features"],
                             atol=5e-2, rtol=5e-2))
    assert bool(jnp.allclose(out["text_features"], ref["text_features"],
                             atol=5e-2, rtol=5e-2))
    assert bool(jnp.allclose(out["loss_img"], ref["loss_img"], atol=5e-2, rtol=5e-2))
    assert bool(jnp.allclose(out["loss_txt"], ref["loss_txt"], atol=5e-2, rtol=5e-2))
    assert bool(jnp.allclose(out["loss"], ref["loss"], atol=5e-2, rtol=5e-2))

    print("KERNEL_OK")
</pallas_src>

<mosaic_0001>
module attributes {stable_mosaic.version = 11 : i64} {
  func.func @_encode_kernel(%arg0: i32, %arg1: memref<1x16x128xbf16, #tpu.memory_space<vmem>>, %arg2: memref<1x128x128xbf16, #tpu.memory_space<vmem>>, %arg3: memref<1x128x128xbf16, #tpu.memory_space<vmem>>, %arg4: memref<1x16x128xf32, #tpu.memory_space<vmem>>) attributes {dimension_semantics = [#tpu.dimension_semantics<parallel>], iteration_bounds = array<i64: 2>, scalar_prefetch = 0 : i64, scratch_operands = 0 : i64, tpu.core_type = #tpu.core_type<tc>, window_params = [{transform_indices = @transform_0, window_bounds = array<i64: 1, 16, 128>}, {transform_indices = @transform_1, window_bounds = array<i64: 1, 128, 128>}, {transform_indices = @transform_2, window_bounds = array<i64: 1, 128, 128>}, {transform_indices = @transform_3, window_bounds = array<i64: 1, 16, 128>}]} {
    %c0 = arith.constant 0 : index
    %c0_0 = arith.constant 0 : index
    %c0_1 = arith.constant 0 : index
    %0 = vector.load %arg1[%c0, %c0_0, %c0_1] : memref<1x16x128xbf16, #tpu.memory_space<vmem>>, vector<1x16x128xbf16>
    %1 = vector.shape_cast %0 : vector<1x16x128xbf16> to vector<16x128xbf16>
    %c0_2 = arith.constant 0 : index
    %c0_3 = arith.constant 0 : index
    %c0_4 = arith.constant 0 : index
    %2 = vector.load %arg2[%c0_2, %c0_3, %c0_4] : memref<1x128x128xbf16, #tpu.memory_space<vmem>>, vector<1x128x128xbf16>
    %3 = vector.shape_cast %2 : vector<1x128x128xbf16> to vector<128x128xbf16>
    %cst = arith.constant dense<0.000000e+00> : vector<16x128xf32>
    %4 = tpu.matmul %1, %3, %cst {dimension_numbers = #tpu.dot_dimension_numbers<[1], [0], [0], [1], [0, 0, 1, 1], [], []>} : vector<16x128xbf16>, vector<128x128xbf16>, vector<16x128xf32> -> vector<16x128xf32>
    %5 = arith.truncf %4 : vector<16x128xf32> to vector<16x128xbf16>
    %c0_5 = arith.constant 0 : index
    %c0_6 = arith.constant 0 : index
    %c0_7 = arith.constant 0 : index
    %6 = vector.load %arg3[%c0_5, %c0_6, %c0_7] : memref<1x128x128xbf16, #tpu.memory_space<vmem>>, vector<1x128x128xbf16>
    %7 = vector.shape_cast %6 : vector<1x128x128xbf16> to vector<128x128xbf16>
    %cst_8 = arith.constant dense<0.000000e+00> : vector<16x128xf32>
    %8 = tpu.matmul %5, %7, %cst_8 {dimension_numbers = #tpu.dot_dimension_numbers<[1], [0], [0], [1], [0, 0, 1, 1], [], []>} : vector<16x128xbf16>, vector<128x128xbf16>, vector<16x128xf32> -> vector<16x128xf32>
    %9 = arith.mulf %8, %8 : vector<16x128xf32>
    %cst_9 = arith.constant dense<0.000000e+00> : vector<16xf32>
    %10 = vector.multi_reduction <add>, %9, %cst_9 [1] : vector<16x128xf32> to vector<16xf32>
    %11 = vector.shape_cast %10 : vector<16xf32> to vector<16x1xf32>
    %cst_10 = arith.constant 1.000000e-24 : f32
    %12 = vector.broadcast %cst_10 : f32 to vector<16x1xf32>
    %13 = arith.maximumf %11, %12 : vector<16x1xf32>
    %14 = math.rsqrt %13 : vector<16x1xf32>
    %15 = vector.broadcast %14 : vector<16x1xf32> to vector<16x128xf32>
    %16 = arith.mulf %8, %15 : vector<16x128xf32>
    %c0_11 = arith.constant 0 : index
    %c0_12 = arith.constant 0 : index
    %c0_13 = arith.constant 0 : index
    %17 = vector.load %arg4[%c0_11, %c0_12, %c0_13] : memref<1x16x128xf32, #tpu.memory_space<vmem>>, vector<1x16x128xf32>
    %18 = vector.shape_cast %17 : vector<1x16x128xf32> to vector<16x128xf32>
    %19 = vector.shape_cast %16 : vector<16x128xf32> to vector<1x16x128xf32>
    tpu.vector_store %arg4[%c0_11, %c0_12, %c0_13], %19 {strides = array<i32>} : memref<1x16x128xf32, #tpu.memory_space<vmem>>, vector<1x16x128xf32>,
    return
  }
  func.func @transform_0(%arg0: i32) -> (i32, i32, i32) {
    %c0_i32 = arith.constant 0 : i32
    %c0_i32_0 = arith.constant 0 : i32
    %c0_i32_1 = arith.constant 0 : i32
    return %arg0, %c0_i32, %c0_i32_0 : i32, i32, i32
  }
  func.func @transform_1(%arg0: i32) -> (i32, i32, i32) {
    %c0_i32 = arith.constant 0 : i32
    %c0_i32_0 = arith.constant 0 : i32
    %c0_i32_1 = arith.constant 0 : i32
    return %arg0, %c0_i32, %c0_i32_0 : i32, i32, i32
  }
  func.func @transform_2(%arg0: i32) -> (i32, i32, i32) {
    %c0_i32 = arith.constant 0 : i32
    %c0_i32_0 = arith.constant 0 : i32
    %c0_i32_1 = arith.constant 0 : i32
    return %arg0, %c0_i32, %c0_i32_0 : i32, i32, i32
  }
  func.func @transform_3(%arg0: i32) -> (i32, i32, i32) {
    %c0_i32 = arith.constant 0 : i32
    %c0_i32_0 = arith.constant 0 : i32
    %c0_i32_1 = arith.constant 0 : i32
    return %arg0, %c0_i32, %c0_i32_0 : i32, i32, i32
  }
}

module attributes {stable_mosaic.version = 11 : i64} {
  func.func @_loss_kernel(%arg0: i32, %arg1: i32, %arg2: memref<1xf32, #tpu.memory_space<smem>>, %arg3: memref<1x16x128xf32, #tpu.memory_space<vmem>>, %arg4: memref<1x16x128xf32, #tpu.memory_space<vmem>>, %arg5: memref<16x16xf32, #tpu.memory_space<vmem>>, %arg6: memref<1x128xf32, #tpu.memory_space<vmem>>, %arg7: memref<16x1xf32, #tpu.memory_space<vmem>>, %arg8: memref<16x1xf32, #tpu.memory_space<vmem>>, %arg9: memref<16x1xf32, #tpu.memory_space<vmem>>, %arg10: memref<1x1x16xf32, #tpu.memory_space<vmem>>, %arg11: memref<1x1x16xf32, #tpu.memory_space<vmem>>, %arg12: memref<1x1x16xf32, #tpu.memory_space<vmem>>, %arg13: memref<1x1xf32, #tpu.memory_space<vmem>>, %arg14: memref<1x1xf32, #tpu.memory_space<vmem>>) attributes {dimension_semantics = [#tpu.dimension_semantics<arbitrary>, #tpu.dimension_semantics<arbitrary>], iteration_bounds = array<i64: 1, 1>, scalar_prefetch = 0 : i64, scratch_operands = 8 : i64, tpu.core_type = #tpu.core_type<tc>, window_params = [{transform_indices = @transform_0, window_bounds = array<i64: 1>}, {transform_indices = @transform_1, window_bounds = array<i64: 1, 16, 128>}, {transform_indices = @transform_2, window_bounds = array<i64: 1, 16, 128>}, {transform_indices = @transform_3, window_bounds = array<i64: 16, 16>}, {pipeline_mode = #tpu.pipeline_mode<synchronous>, transform_indices = @transform_4, window_bounds = array<i64: 1, 128>}]} {
    %c0_i32 = arith.constant 0 : i32
    %0 = arith.cmpi eq, %arg0, %c0_i32 : i32
    %c0_i32_0 = arith.constant 0 : i32
    %1 = arith.cmpi eq, %arg1, %c0_i32_0 : i32
    %2 = arith.andi %0, %1 : i1
    %3 = arith.extui %2 : i1 to i32
    %c0_i32_1 = arith.constant 0 : i32
    %4 = arith.cmpi ne, %3, %c0_i32_1 : i32
    scf.if %4 {
      %cst_45 = arith.constant 0.000000e+00 : f32
      %94 = vector.broadcast %cst_45 : f32 to vector<1x1xf32>
      %c0_46 = arith.constant 0 : index
      %c0_47 = arith.constant 0 : index
      %95 = vector.load %arg13[%c0_46, %c0_47] : memref<1x1xf32, #tpu.memory_space<vmem>>, vector<1x1xf32>
      tpu.vector_store %arg13[%c0_46, %c0_47], %94 {strides = array<i32>} : memref<1x1xf32, #tpu.memory_space<vmem>>, vector<1x1xf32>,
      %cst_48 = arith.constant 0.000000e+00 : f32
      %96 = vector.broadcast %cst_48 : f32 to vector<1x1xf32>
      %c0_49 = arith.constant 0 : index
      %c0_50 = arith.constant 0 : index
      %97 = vector.load %arg14[%c0_49, %c0_50] : memref<1x1xf32, #tpu.memory_space<vmem>>, vector<1x1xf32>
      tpu.vector_store %arg14[%c0_49, %c0_50], %96 {strides = array<i32>} : memref<1x1xf32, #tpu.memory_space<vmem>>, vector<1x1xf32>,
      %cst_51 = arith.constant 0.000000e+00 : f32
      %98 = vector.broadcast %cst_51 : f32 to vector<1x128xf32>
      %c0_52 = arith.constant 0 : index
      %c0_53 = arith.constant 0 : index
      %99 = vector.load %arg6[%c0_52, %c0_53] : memref<1x128xf32, #tpu.memory_space<vmem>>, vector<1x128xf32>
      tpu.vector_store %arg6[%c0_52, %c0_53], %98 {strides = array<i32>} : memref<1x128xf32, #tpu.memory_space<vmem>>, vector<1x128xf32>,
    } else {
    }
    %c0_i32_2 = arith.constant 0 : i32
    %5 = arith.cmpi eq, %arg1, %c0_i32_2 : i32
    %6 = arith.extui %5 : i1 to i32
    %c0_i32_3 = arith.constant 0 : i32
    %7 = arith.cmpi ne, %6, %c0_i32_3 : i32
    scf.if %7 {
      %cst_45 = arith.constant 0xFF800000 : f32
      %94 = vector.broadcast %cst_45 : f32 to vector<16x1xf32>
      %c0_46 = arith.constant 0 : index
      %c0_47 = arith.constant 0 : index
      %95 = vector.load %arg7[%c0_46, %c0_47] : memref<16x1xf32, #tpu.memory_space<vmem>>, vector<16x1xf32>
      tpu.vector_store %arg7[%c0_46, %c0_47], %94 {strides = array<i32>} : memref<16x1xf32, #tpu.memory_space<vmem>>, vector<16x1xf32>,
      %cst_48 = arith.constant 0.000000e+00 : f32
      %96 = vector.broadcast %cst_48 : f32 to vector<16x1xf32>
      %c0_49 = arith.constant 0 : index
      %c0_50 = arith.constant 0 : index
      %97 = vector.load %arg8[%c0_49, %c0_50] : memref<16x1xf32, #tpu.memory_space<vmem>>, vector<16x1xf32>
      tpu.vector_store %arg8[%c0_49, %c0_50], %96 {strides = array<i32>} : memref<16x1xf32, #tpu.memory_space<vmem>>, vector<16x1xf32>,
      %cst_51 = arith.constant 0.000000e+00 : f32
      %98 = vector.broadcast %cst_51 : f32 to vector<16x1xf32>
      %c0_52 = arith.constant 0 : index
      %c0_53 = arith.constant 0 : index
      %99 = vector.load %arg9[%c0_52, %c0_53] : memref<16x1xf32, #tpu.memory_space<vmem>>, vector<16x1xf32>
      tpu.vector_store %arg9[%c0_52, %c0_53], %98 {strides = array<i32>} : memref<16x1xf32, #tpu.memory_space<vmem>>, vector<16x1xf32>,
    } else {
    }
    %c0_i32_4 = arith.constant 0 : i32
    %8 = arith.cmpi eq, %arg0, %c0_i32_4 : i32
    %9 = arith.extui %8 : i1 to i32
    %c0_i32_5 = arith.constant 0 : i32
    %10 = arith.cmpi ne, %9, %c0_i32_5 : i32
    scf.if %10 {
      %cst_45 = arith.constant 0xFF800000 : f32
      %94 = vector.broadcast %cst_45 : f32 to vector<1x16xf32>
      %95 = arith.index_cast %arg1 : i32 to index
      %c0_46 = arith.constant 0 : index
      %c0_47 = arith.constant 0 : index
      %96 = vector.load %arg10[%95, %c0_46, %c0_47] : memref<1x1x16xf32, #tpu.memory_space<vmem>>, vector<1x1x16xf32>
      %97 = vector.shape_cast %96 : vector<1x1x16xf32> to vector<1x16xf32>
      %98 = vector.shape_cast %94 : vector<1x16xf32> to vector<1x1x16xf32>
      tpu.vector_store %arg10[%95, %c0_46, %c0_47], %98 {strides = array<i32>} : memref<1x1x16xf32, #tpu.memory_space<vmem>>, vector<1x1x16xf32>,
      %cst_48 = arith.constant 0.000000e+00 : f32
      %99 = vector.broadcast %cst_48 : f32 to vector<1x16xf32>
      %100 = arith.index_cast %arg1 : i32 to index
      %c0_49 = arith.constant 0 : index
      %c0_50 = arith.constant 0 : index
      %101 = vector.load %arg11[%100, %c0_49, %c0_50] : memref<1x1x16xf32, #tpu.memory_space<vmem>>, vector<1x1x16xf32>
      %102 = vector.shape_cast %101 : vector<1x1x16xf32> to vector<1x16xf32>
      %103 = vector.shape_cast %99 : vector<1x16xf32> to vector<1x1x16xf32>
      tpu.vector_store %arg11[%100, %c0_49, %c0_50], %103 {strides = array<i32>} : memref<1x1x16xf32, #tpu.memory_space<vmem>>, vector<1x1x16xf32>,
      %cst_51 = arith.constant 0.000000e+00 : f32
      %104 = vector.broadcast %cst_51 : f32 to vector<1x16xf32>
      %105 = arith.index_cast %arg1 : i32 to index
      %c0_52 = arith.constant 0 : index
      %c0_53 = arith.constant 0 : index
      %106 = vector.load %arg12[%105, %c0_52, %c0_53] : memref<1x1x16xf32, #tpu.memory_space<vmem>>, vector<1x1x16xf32>
      %107 = vector.shape_cast %106 : vector<1x1x16xf32> to vector<1x16xf32>
      %108 = vector.shape_cast %104 : vector<1x16xf32> to vector<1x1x16xf32>
      tpu.vector_store %arg12[%105, %c0_52, %c0_53], %108 {strides = array<i32>} : memref<1x1x16xf32, #tpu.memory_space<vmem>>, vector<1x1x16xf32>,
    } else {
    }
    %c0 = arith.constant 0 : index
    %11 = memref.load %arg2[%c0] : memref<1xf32, #tpu.memory_space<smem>>
    %12 = math.exp %11 : f32
    %c0_6 = arith.constant 0 : index
    %c0_7 = arith.constant 0 : index
    %c0_8 = arith.constant 0 : index
    %13 = vector.load %arg3[%c0_6, %c0_7, %c0_8] : memref<1x16x128xf32, #tpu.memory_space<vmem>>, vector<1x16x128xf32>
    %14 = vector.shape_cast %13 : vector<1x16x128xf32> to vector<16x128xf32>
    %15 = arith.truncf %14 : vector<16x128xf32> to vector<16x128xbf16>
    %c0_9 = arith.constant 0 : index
    %c0_10 = arith.constant 0 : index
    %c0_11 = arith.constant 0 : index
    %16 = vector.load %arg4[%c0_9, %c0_10, %c0_11] : memref<1x16x128xf32, #tpu.memory_space<vmem>>, vector<1x16x128xf32>
    %17 = vector.shape_cast %16 : vector<1x16x128xf32> to vector<16x128xf32>
    %18 = arith.truncf %17 : vector<16x128xf32> to vector<16x128xbf16>
    %cst = arith.constant dense<0.000000e+00> : vector<16x16xf32>
    %19 = tpu.matmul %15, %18, %cst {dimension_numbers = #tpu.dot_dimension_numbers<[1], [1], [0], [0], [0, 0, 1, 0], [], []>} : vector<16x128xbf16>, vector<16x128xbf16>, vector<16x16xf32> -> vector<16x16xf32>
    %20 = vector.broadcast %12 : f32 to vector<16x16xf32>
    %21 = arith.mulf %19, %20 : vector<16x16xf32>
    %c0_12 = arith.constant 0 : index
    %c0_13 = arith.constant 0 : index
    %22 = vector.load %arg5[%c0_12, %c0_13] : memref<16x16xf32, #tpu.memory_space<vmem>>, vector<16x16xf32>
    tpu.vector_store %arg5[%c0_12, %c0_13], %21 {strides = array<i32>} : memref<16x16xf32, #tpu.memory_space<vmem>>, vector<16x16xf32>,
    %c16_i32 = arith.constant 16 : i32
    %23 = arith.muli %arg0, %c16_i32 : i32
    %24 = tpu.iota {dimensions = array<i32: 0>} : vector<16x16xi32>
    %25 = vector.broadcast %23 : i32 to vector<16x16xi32>
    %26 = arith.addi %25, %24 : vector<16x16xi32>
    %c16_i32_14 = arith.constant 16 : i32
    %27 = arith.muli %arg1, %c16_i32_14 : i32
    %28 = tpu.iota {dimensions = array<i32: 1>} : vector<16x16xi32>
    %29 = vector.broadcast %27 : i32 to vector<16x16xi32>
    %30 = arith.addi %29, %28 : vector<16x16xi32>
    %c4_i32 = arith.constant 4 : i32
    %31 = vector.broadcast %c4_i32 : i32 to vector<16x16xi32>
    %32 = arith.cmpi slt, %26, %31 : vector<16x16xi32>
    %c4_i32_15 = arith.constant 4 : i32
    %33 = vector.broadcast %c4_i32_15 : i32 to vector<16x16xi32>
    %34 = arith.cmpi slt, %30, %33 : vector<16x16xi32>
    %35 = arith.andi %32, %34 : vector<16x16xi1>
    %cst_16 = arith.constant -1.000000e+30 : f32
    %36 = vector.broadcast %cst_16 : f32 to vector<16x16xf32>
    %37 = arith.select %35, %21, %36 : vector<16x16xi1>, vector<16x16xf32>
    %38 = arith.cmpi eq, %arg0, %arg1 : i32
    %39 = arith.extui %38 : i1 to i32
    %c0_i32_17 = arith.constant 0 : i32
    %40 = arith.cmpi ne, %39, %c0_i32_17 : i32
    scf.if %40 {
      %94 = tpu.iota {dimensions = array<i32: 0>} : vector<16x16xi32>
      %95 = tpu.iota {dimensions = array<i32: 1>} : vector<16x16xi32>
      %96 = arith.cmpi eq, %94, %95 : vector<16x16xi32>
      %cst_45 = arith.constant 0.000000e+00 : f32
      %97 = vector.broadcast %cst_45 : f32 to vector<16x16xf32>
      %98 = arith.select %96, %21, %97 : vector<16x16xi1>, vector<16x16xf32>
      %cst_46 = arith.constant dense<0.000000e+00> : vector<16xf32>
      %99 = vector.multi_reduction <add>, %98, %cst_46 [1] : vector<16x16xf32> to vector<16xf32>
      %100 = vector.shape_cast %99 : vector<16xf32> to vector<16x1xf32>
      %c0_47 = arith.constant 0 : index
      %c0_48 = arith.constant 0 : index
      %101 = vector.load %arg9[%c0_47, %c0_48] : memref<16x1xf32, #tpu.memory_space<vmem>>, vector<16x1xf32>
      tpu.vector_store %arg9[%c0_47, %c0_48], %100 {strides = array<i32>} : memref<16x1xf32, #tpu.memory_space<vmem>>, vector<16x1xf32>,
      %cst_49 = arith.constant dense<0.000000e+00> : vector<16xf32>
      %102 = vector.multi_reduction <add>, %98, %cst_49 [0] : vector<16x16xf32> to vector<16xf32>
      %103 = vector.shape_cast %102 : vector<16xf32> to vector<1x16xf32>
      %104 = arith.index_cast %arg1 : i32 to index
      %c0_50 = arith.constant 0 : index
      %c0_51 = arith.constant 0 : index
      %105 = vector.load %arg12[%104, %c0_50, %c0_51] : memref<1x1x16xf32, #tpu.memory_space<vmem>>, vector<1x1x16xf32>
      %106 = vector.shape_cast %105 : vector<1x1x16xf32> to vector<1x16xf32>
      %107 = vector.shape_cast %103 : vector<1x16xf32> to vector<1x1x16xf32>
      tpu.vector_store %arg12[%104, %c0_50, %c0_51], %107 {strides = array<i32>} : memref<1x1x16xf32, #tpu.memory_space<vmem>>, vector<1x1x16xf32>,
    } else {
    }
    %c0_18 = arith.constant 0 : index
    %c0_19 = arith.constant 0 : index
    %41 = vector.load %arg7[%c0_18, %c0_19] : memref<16x1xf32, #tpu.memory_space<vmem>>, vector<16x1xf32>
    %cst_20 = arith.constant dense<0xFF800000> : vector<16xf32>
    %42 = vector.multi_reduction <maximumf>, %37, %cst_20 [1] : vector<16x16xf32> to vector<16xf32>
    %43 = vector.shape_cast %42 : vector<16xf32> to vector<16x1xf32>
    %44 = arith.maximumf %41, %43 : vector<16x1xf32>
    %45 = arith.subf %41, %44 : vector<16x1xf32>
    %46 = math.exp %45 : vector<16x1xf32>
    %c0_21 = arith.constant 0 : index
    %c0_22 = arith.constant 0 : index
    %47 = vector.load %arg8[%c0_21, %c0_22] : memref<16x1xf32, #tpu.memory_space<vmem>>, vector<16x1xf32>
    %48 = arith.mulf %46, %47 : vector<16x1xf32>
    %49 = vector.broadcast %44 : vector<16x1xf32> to vector<16x16xf32>
    %50 = arith.subf %37, %49 : vector<16x16xf32>
    %51 = math.exp %50 : vector<16x16xf32>
    %cst_23 = arith.constant dense<0.000000e+00> : vector<16xf32>
    %52 = vector.multi_reduction <add>, %51, %cst_23 [1] : vector<16x16xf32> to vector<16xf32>
    %53 = vector.shape_cast %52 : vector<16xf32> to vector<16x1xf32>
    %54 = arith.addf %48, %53 : vector<16x1xf32>
    %c0_24 = arith.constant 0 : index
    %c0_25 = arith.constant 0 : index
    %55 = vector.load %arg8[%c0_24, %c0_25] : memref<16x1xf32, #tpu.memory_space<vmem>>, vector<16x1xf32>
    tpu.vector_store %arg8[%c0_24, %c0_25], %54 {strides = array<i32>} : memref<16x1xf32, #tpu.memory_space<vmem>>, vector<16x1xf32>,
    %c0_26 = arith.constant 0 : index
    %c0_27 = arith.constant 0 : index
    %56 = vector.load %arg7[%c0_26, %c0_27] : memref<16x1xf32, #tpu.memory_space<vmem>>, vector<16x1xf32>
    tpu.vector_store %arg7[%c0_26, %c0_27], %44 {strides = array<i32>} : memref<16x1xf32, #tpu.memory_space<vmem>>, vector<16x1xf32>,
    %57 = arith.index_cast %arg1 : i32 to index
    %c0_28 = arith.constant 0 : index
    %c0_29 = arith.constant 0 : index
    %58 = vector.load %arg10[%57, %c0_28, %c0_29] : memref<1x1x16xf32, #tpu.memory_space<vmem>>, vector<1x1x16xf32>
    %59 = vector.shape_cast %58 : vector<1x1x16xf32> to vector<1x16xf32>
    %cst_30 = arith.constant dense<0xFF800000> : vector<16xf32>
    %60 = vector.multi_reduction <maximumf>, %37, %cst_30 [0] : vector<16x16xf32> to vector<16xf32>
    %61 = vector.shape_cast %60 : vector<16xf32> to vector<1x16xf32>
    %62 = arith.maximumf %59, %61 : vector<1x16xf32>
    %63 = arith.subf %59, %62 : vector<1x16xf32>
    %64 = math.exp %63 : vector<1x16xf32>
    %65 = arith.index_cast %arg1 : i32 to index
    %c0_31 = arith.constant 0 : index
    %c0_32 = arith.constant 0 : index
    %66 = vector.load %arg11[%65, %c0_31, %c0_32] : memref<1x1x16xf32, #tpu.memory_space<vmem>>, vector<1x1x16xf32>
    %67 = vector.shape_cast %66 : vector<1x1x16xf32> to vector<1x16xf32>
    %68 = arith.mulf %64, %67 : vector<1x16xf32>
    %69 = vector.broadcast %62 : vector<1x16xf32> to vector<16x16xf32>
    %70 = arith.subf %37, %69 : vector<16x16xf32>
    %71 = math.exp %70 : vector<16x16xf32>
    %cst_33 = arith.constant dense<0.000000e+00> : vector<16xf32>
    %72 = vector.multi_reduction <add>, %71, %cst_33 [0] : vector<16x16xf32> to vector<16xf32>
    %73 = vector.shape_cast %72 : vector<16xf32> to vector<1x16xf32>
    %74 = arith.addf %68, %73 : vector<1x16xf32>
    %75 = arith.index_cast %arg1 : i32 to index
    %c0_34 = arith.constant 0 : index
    %c0_35 = arith.constant 0 : index
    %76 = vector.load %arg11[%75, %c0_34, %c0_35] : memref<1x1x16xf32, #tpu.memory_space<vmem>>, vector<1x1x16xf32>
    %77 = vector.shape_cast %76 : vector<1x1x16xf32> to vector<1x16xf32>
    %78 = vector.shape_cast %74 : vector<1x16xf32> to vector<1x1x16xf32>
    tpu.vector_store %arg11[%75, %c0_34, %c0_35], %78 {strides = array<i32>} : memref<1x1x16xf32, #tpu.memory_space<vmem>>, vector<1x1x16xf32>,
    %79 = arith.index_cast %arg1 : i32 to index
    %c0_36 = arith.constant 0 : index
    %c0_37 = arith.constant 0 : index
    %80 = vector.load %arg10[%79, %c0_36, %c0_37] : memref<1x1x16xf32, #tpu.memory_space<vmem>>, vector<1x1x16xf32>
    %81 = vector.shape_cast %80 : vector<1x1x16xf32> to vector<1x16xf32>
    %82 = vector.shape_cast %62 : vector<1x16xf32> to vector<1x1x16xf32>
    tpu.vector_store %arg10[%79, %c0_36, %c0_37], %82 {strides = array<i32>} : memref<1x1x16xf32, #tpu.memory_space<vmem>>, vector<1x1x16xf32>,
    %c0_i32_38 = arith.constant 0 : i32
    %83 = arith.cmpi eq, %arg1, %c0_i32_38 : i32
    %84 = arith.extui %83 : i1 to i32
    %c0_i32_39 = arith.constant 0 : i32
    %85 = arith.cmpi ne, %84, %c0_i32_39 : i32
    scf.if %85 {
      %c0_45 = arith.constant 0 : index
      %c0_46 = arith.constant 0 : index
      %94 = vector.load %arg7[%c0_45, %c0_46] : memref<16x1xf32, #tpu.memory_space<vmem>>, vector<16x1xf32>
      %c0_47 = arith.constant 0 : index
      %c0_48 = arith.constant 0 : index
      %95 = vector.load %arg8[%c0_47, %c0_48] : memref<16x1xf32, #tpu.memory_space<vmem>>, vector<16x1xf32>
      %96 = math.log %95 : vector<16x1xf32>
      %97 = arith.addf %94, %96 : vector<16x1xf32>
      %c0_49 = arith.constant 0 : index
      %c0_50 = arith.constant 0 : index
      %98 = vector.load %arg9[%c0_49, %c0_50] : memref<16x1xf32, #tpu.memory_space<vmem>>, vector<16x1xf32>
      %99 = arith.subf %97, %98 : vector<16x1xf32>
      %c16_i32_51 = arith.constant 16 : i32
      %100 = arith.muli %arg0, %c16_i32_51 : i32
      %101 = tpu.iota {dimensions = array<i32: 0>} : vector<16x1xi32>
      %102 = vector.broadcast %100 : i32 to vector<16x1xi32>
      %103 = arith.addi %102, %101 : vector<16x1xi32>
      %c4_i32_52 = arith.constant 4 : i32
      %104 = vector.broadcast %c4_i32_52 : i32 to vector<16x1xi32>
      %105 = arith.cmpi slt, %103, %104 : vector<16x1xi32>
      %cst_53 = arith.constant 0.000000e+00 : f32
      %106 = vector.broadcast %cst_53 : f32 to vector<16x1xf32>
      %107 = arith.select %105, %99, %106 : vector<16x1xi1>, vector<16x1xf32>
      %c0_54 = arith.constant 0 : index
      %c0_55 = arith.constant 0 : index
      %108 = vector.load %arg13[%c0_54, %c0_55] : memref<1x1xf32, #tpu.memory_space<vmem>>, vector<1x1xf32>
      %cst_56 = arith.constant dense<0.000000e+00> : vector<1xf32>
      %109 = vector.multi_reduction <add>, %107, %cst_56 [0] : vector<16x1xf32> to vector<1xf32>
      %110 = vector.shape_cast %109 : vector<1xf32> to vector<1x1xf32>
      %111 = arith.addf %108, %110 : vector<1x1xf32>
      %c0_57 = arith.constant 0 : index
      %c0_58 = arith.constant 0 : index
      %112 = vector.load %arg13[%c0_57, %c0_58] : memref<1x1xf32, #tpu.memory_space<vmem>>, vector<1x1xf32>
      tpu.vector_store %arg13[%c0_57, %c0_58], %111 {strides = array<i32>} : memref<1x1xf32, #tpu.memory_space<vmem>>, vector<1x1xf32>,
    } else {
    }
    %c0_i32_40 = arith.constant 0 : i32
    %86 = arith.cmpi eq, %arg0, %c0_i32_40 : i32
    %87 = arith.extui %86 : i1 to i32
    %c0_i32_41 = arith.constant 0 : i32
    %88 = arith.cmpi ne, %87, %c0_i32_41 : i32
    scf.if %88 {
      %94 = arith.index_cast %arg1 : i32 to index
      %c0_45 = arith.constant 0 : index
      %c0_46 = arith.constant 0 : index
      %95 = vector.load %arg10[%94, %c0_45, %c0_46] : memref<1x1x16xf32, #tpu.memory_space<vmem>>, vector<1x1x16xf32>
      %96 = vector.shape_cast %95 : vector<1x1x16xf32> to vector<1x16xf32>
      %97 = arith.index_cast %arg1 : i32 to index
      %c0_47 = arith.constant 0 : index
      %c0_48 = arith.constant 0 : index
      %98 = vector.load %arg11[%97, %c0_47, %c0_48] : memref<1x1x16xf32, #tpu.memory_space<vmem>>, vector<1x1x16xf32>
      %99 = vector.shape_cast %98 : vector<1x1x16xf32> to vector<1x16xf32>
      %100 = math.log %99 : vector<1x16xf32>
      %101 = arith.addf %96, %100 : vector<1x16xf32>
      %102 = arith.index_cast %arg1 : i32 to index
      %c0_49 = arith.constant 0 : index
      %c0_50 = arith.constant 0 : index
      %103 = vector.load %arg12[%102, %c0_49, %c0_50] : memref<1x1x16xf32, #tpu.memory_space<vmem>>, vector<1x1x16xf32>
      %104 = vector.shape_cast %103 : vector<1x1x16xf32> to vector<1x16xf32>
      %105 = arith.subf %101, %104 : vector<1x16xf32>
      %c16_i32_51 = arith.constant 16 : i32
      %106 = arith.muli %arg1, %c16_i32_51 : i32
      %107 = tpu.iota {dimensions = array<i32: 1>} : vector<1x16xi32>
      %108 = vector.broadcast %106 : i32 to vector<1x16xi32>
      %109 = arith.addi %108, %107 : vector<1x16xi32>
      %c4_i32_52 = arith.constant 4 : i32
      %110 = vector.broadcast %c4_i32_52 : i32 to vector<1x16xi32>
      %111 = arith.cmpi slt, %109, %110 : vector<1x16xi32>
      %cst_53 = arith.constant 0.000000e+00 : f32
      %112 = vector.broadcast %cst_53 : f32 to vector<1x16xf32>
      %113 = arith.select %111, %105, %112 : vector<1x16xi1>, vector<1x16xf32>
      %c0_54 = arith.constant 0 : index
      %c0_55 = arith.constant 0 : index
      %114 = vector.load %arg14[%c0_54, %c0_55] : memref<1x1xf32, #tpu.memory_space<vmem>>, vector<1x1xf32>
      %cst_56 = arith.constant dense<0.000000e+00> : vector<1xf32>
      %115 = vector.multi_reduction <add>, %113, %cst_56 [1] : vector<1x16xf32> to vector<1xf32>
      %116 = vector.shape_cast %115 : vector<1xf32> to vector<1x1xf32>
      %117 = arith.addf %114, %116 : vector<1x1xf32>
      %c0_57 = arith.constant 0 : index
      %c0_58 = arith.constant 0 : index
      %118 = vector.load %arg14[%c0_57, %c0_58] : memref<1x1xf32, #tpu.memory_space<vmem>>, vector<1x1xf32>
      tpu.vector_store %arg14[%c0_57, %c0_58], %117 {strides = array<i32>} : memref<1x1xf32, #tpu.memory_space<vmem>>, vector<1x1xf32>,
    } else {
    }
    %c0_i32_42 = arith.constant 0 : i32
    %89 = arith.cmpi eq, %arg0, %c0_i32_42 : i32
    %c0_i32_43 = arith.constant 0 : i32
    %90 = arith.cmpi eq, %arg1, %c0_i32_43 : i32
    %91 = arith.andi %89, %90 : i1
    %92 = arith.extui %91 : i1 to i32
    %c0_i32_44 = arith.constant 0 : i32
    %93 = arith.cmpi ne, %92, %c0_i32_44 : i32
    scf.if %93 {
      %c0_45 = arith.constant 0 : index
      %c0_46 = arith.constant 0 : index
      %94 = vector.load %arg13[%c0_45, %c0_46] : memref<1x1xf32, #tpu.memory_space<vmem>>, vector<1x1xf32>
      %cst_47 = arith.constant 2.500000e-01 : f32
      %95 = vector.broadcast %cst_47 : f32 to vector<1x1xf32>
      %96 = arith.mulf %94, %95 : vector<1x1xf32>
      %c0_48 = arith.constant 0 : index
      %c0_49 = arith.constant 0 : index
      %97 = vector.load %arg14[%c0_48, %c0_49] : memref<1x1xf32, #tpu.memory_space<vmem>>, vector<1x1xf32>
      %cst_50 = arith.constant 2.500000e-01 : f32
      %98 = vector.broadcast %cst_50 : f32 to vector<1x1xf32>
      %99 = arith.mulf %97, %98 : vector<1x1xf32>
      %100 = arith.addf %96, %99 : vector<1x1xf32>
      %cst_51 = arith.constant 5.000000e-01 : f32
      %101 = vector.broadcast %cst_51 : f32 to vector<1x1xf32>
      %102 = arith.mulf %101, %100 : vector<1x1xf32>
      %103 = tpu.iota {dimensions = array<i32: 1>} : vector<1x128xi32>
      %c0_i32_52 = arith.constant 0 : i32
      %104 = vector.broadcast %c0_i32_52 : i32 to vector<1x128xi32>
      %105 = arith.cmpi eq, %103, %104 : vector<1x128xi32>
      %cst_53 = arith.constant 0.000000e+00 : f32
      %106 = vector.shape_cast %96 : vector<1x1xf32> to vector<1x1xf32>
      %107 = vector.broadcast %106 : vector<1x1xf32> to vector<1x128xf32>
      %108 = vector.broadcast %cst_53 : f32 to vector<1x128xf32>
      %109 = arith.select %105, %107, %108 : vector<1x128xi1>, vector<1x128xf32>
      %c1_i32 = arith.constant 1 : i32
      %110 = vector.broadcast %c1_i32 : i32 to vector<1x128xi32>
      %111 = arith.cmpi eq, %103, %110 : vector<1x128xi32>
      %cst_54 = arith.constant 0.000000e+00 : f32
      %112 = vector.shape_cast %99 : vector<1x1xf32> to vector<1x1xf32>
      %113 = vector.broadcast %112 : vector<1x1xf32> to vector<1x128xf32>
      %114 = vector.broadcast %cst_54 : f32 to vector<1x128xf32>
      %115 = arith.select %111, %113, %114 : vector<1x128xi1>, vector<1x128xf32>
      %116 = arith.addf %109, %115 : vector<1x128xf32>
      %c2_i32 = arith.constant 2 : i32
      %117 = vector.broadcast %c2_i32 : i32 to vector<1x128xi32>
      %118 = arith.cmpi eq, %103, %117 : vector<1x128xi32>
      %cst_55 = arith.constant 0.000000e+00 : f32
      %119 = vector.shape_cast %102 : vector<1x1xf32> to vector<1x1xf32>
      %120 = vector.broadcast %119 : vector<1x1xf32> to vector<1x128xf32>
      %121 = vector.broadcast %cst_55 : f32 to vector<1x128xf32>
      %122 = arith.select %118, %120, %121 : vector<1x128xi1>, vector<1x128xf32>
      %123 = arith.addf %116, %122 : vector<1x128xf32>
      %c0_56 = arith.constant 0 : index
      %c0_57 = arith.constant 0 : index
      %124 = vector.load %arg6[%c0_56, %c0_57] : memref<1x128xf32, #tpu.memory_space<vmem>>, vector<1x128xf32>
      tpu.vector_store %arg6[%c0_56, %c0_57], %123 {strides = array<i32>} : memref<1x128xf32, #tpu.memory_space<vmem>>, vector<1x128xf32>,
    } else {
    }
    return
  }
  func.func @transform_0(%arg0: i32, %arg1: i32) -> i32 {
    %c0_i32 = arith.constant 0 : i32
    %c0_i32_0 = arith.constant 0 : i32
    return %c0_i32 : i32
  }
  func.func @transform_1(%arg0: i32, %arg1: i32) -> (i32, i32, i32) {
    %c0_i32 = arith.constant 0 : i32
    %c0_i32_0 = arith.constant 0 : i32
    %c0_i32_1 = arith.constant 0 : i32
    return %c0_i32, %arg0, %c0_i32_0 : i32, i32, i32
  }
  func.func @transform_2(%arg0: i32, %arg1: i32) -> (i32, i32, i32) {
    %c1_i32 = arith.constant 1 : i32
    %c0_i32 = arith.constant 0 : i32
    %c0_i32_0 = arith.constant 0 : i32
    return %c1_i32, %arg1, %c0_i32 : i32, i32, i32
  }
  func.func @transform_3(%arg0: i32, %arg1: i32) -> (i32, i32) {
    %c0_i32 = arith.constant 0 : i32
    return %arg0, %arg1 : i32, i32
  }
  func.func @transform_4(%arg0: i32, %arg1: i32) -> (i32, i32) {
    %c0_i32 = arith.constant 0 : i32
    %c0_i32_0 = arith.constant 0 : i32
    %c0_i32_1 = arith.constant 0 : i32
    return %c0_i32, %c0_i32_0 : i32, i32
  }
}

</mosaic_0001>

<llo_original>
// kernel: _lambda_.3
$region0: #{_lambda_.3}
  #allocation0 [shape = 'u32[]', space=smem, size = 0x4, offset = 0x4, fixed_abs, tag = 'smem constant byte address 0x4 - core index']
  #allocation1 [shape = 'u32[72,128]{1,0:T(1,128)}', space=vmem, size = 0x9000, scoped, tag = 'internal scratch']
  #allocation2 [shape = 'f32[16,1]{1,0:T(8,128)}', space=vmem, size = 0x2000, scoped, tag = 'scratch operand']
  #allocation3 [shape = 'f32[16,1]{1,0:T(8,128)}', space=vmem, size = 0x2000, scoped, tag = 'scratch operand']
  #allocation4 [shape = 'f32[16,1]{1,0:T(8,128)}', space=vmem, size = 0x2000, scoped, tag = 'scratch operand']
  #allocation5 [shape = 'f32[1,1,16]{2,1,0:T(1,128)}', space=vmem, size = 0x200, scoped, tag = 'scratch operand']
  #allocation6 [shape = 'f32[1,1,16]{2,1,0:T(1,128)}', space=vmem, size = 0x200, scoped, tag = 'scratch operand']
  #allocation7 [shape = 'f32[1,1,16]{2,1,0:T(1,128)}', space=vmem, size = 0x200, scoped, tag = 'scratch operand']
  #allocation8 [shape = 'f32[1,1]{1,0:T(1,128)}', space=vmem, size = 0x200, scoped, tag = 'scratch operand']
  #allocation9 [shape = 'f32[1,1]{1,0:T(1,128)}', space=vmem, size = 0x200, scoped, tag = 'scratch operand']
  #allocation10 [shape = 'f32[1]{0:T(128)S(6)}', space=smem, size = 0x200, scoped, tag = 'scoped memory for _lambda_.3']
  %s0 = inlined_call_operand.<no memory space> [shape: f32[1], index: 0, kind: input, shape index: {}]
  %s1 = inlined_call_operand.vmem [shape: f32[2,16,128], index: 1, kind: input, shape index: {}, may-alias: {1,2}]
  %s2 = inlined_call_operand.vmem [shape: f32[2,16,128], index: 2, kind: input, shape index: {}, may-alias: {1,2}]
  %s3 = inlined_call_operand.vmem [shape: f32[16,16], index: 3, kind: output, shape index: {0}]
  %s4 = inlined_call_operand.vmem [shape: f32[1,128], index: 4, kind: output, shape index: {1}]
  %5 = xla_tuple %s3, %s4
  %s6 = sld [smem:[#allocation0]]
  $region58: #{_lambda_.3} parent=0
    _
  %s8 = ssub.s32 1, %s6
  %s9 = scalar_select 0, %s8, %s6
  %10 = sst [smem:[#allocation10]] %s0
  // Predicated region
  $region2: #{_lambda_.3} parent=0 // pred_check
    _
  $region3: #{_lambda_.3} parent=0 // pred_check_branch
    %12 = sbr.rel (0) target = $region5
  $region4: #{_lambda_.3} parent=0 // pred_region
    _
  $region5: #{_lambda_.3} parent=0 // pred_fallthru
    _
  // Predicated region
  $region6: #{_lambda_.3} parent=0 // pred_check
    _
  $region7: #{_lambda_.3} parent=0 // pred_check_branch
    %14 = sbr.rel (0) target = $region9
  $region8: #{_lambda_.3} parent=0 // pred_region
    _
  $region9: #{_lambda_.3} parent=0 // pred_fallthru
    _
  // Predicated region
  $region10: #{_lambda_.3} parent=0 // pred_check
    _
  $region11: #{_lambda_.3} parent=0 // pred_check_branch
    %16 = sbr.rel (0) target = $region13
  $region12: #{_lambda_.3} parent=0 // pred_region
    %s17 = scalar_lea.vmem %s2, 16
  $region13: #{_lambda_.3} parent=0 // pred_fallthru
    _
  %s18 = scalar_lea.vmem %s2, 16
  %s19 = scalar_lea.vmem %s2, 16
  %p21 = scmp.eq.s32.totalorder 0, 0
  %p22 = scmp.eq.s32.totalorder 0, 0
  %p23 = pnand %p21, %p22
  %p24 = pneg %p23
  // Predicated region
  $region14: #{_lambda_.3} parent=0 // pred_check
    _
  $region15: #{_lambda_.3} parent=0 // pred_check_branch
    %26 = sbr.rel (%p23) target = $region17
  $region16: #{_lambda_.3} parent=0 // pred_region
    %vm27 = vcmask 0
    %28 = vst.msk [vmem:[#allocation8] sm:$0x1] %vm27, 0.0
    %29 = vst.msk [vmem:[#allocation9] sm:$0x1] %vm27, 0.0
    %30 = vst [vmem:[%s4] sm:$0x1] 0.0
  $region17: #{_lambda_.3} parent=0 // pred_fallthru
    _
  // Predicated region
  $region18: #{_lambda_.3} parent=0 // pred_check
    %p31 = pneg %p22
  $region19: #{_lambda_.3} parent=0 // pred_check_branch
    %33 = sbr.rel (%p31) target = $region21
  $region20: #{_lambda_.3} parent=0 // pred_region
    %vm34 = vcmask 7168
    %35 = vst.msk [vmem:[#allocation2] sm:$0xff] %vm34, -inf
    %36 = vst.msk [vmem:[#allocation2 + $0x8] sm:$0xff] %vm34, -inf
    %37 = vst.msk [vmem:[#allocation3] sm:$0xff] %vm34, 0.0
    %38 = vst.msk [vmem:[#allocation3 + $0x8] sm:$0xff] %vm34, 0.0
    %39 = vst.msk [vmem:[#allocation4] sm:$0xff] %vm34, 0.0
    %40 = vst.msk [vmem:[#allocation4 + $0x8] sm:$0xff] %vm34, 0.0
  $region21: #{_lambda_.3} parent=0 // pred_fallthru
    _
  // Predicated region
  $region22: #{_lambda_.3} parent=0 // pred_check
    %p41 = pneg %p21
  $region23: #{_lambda_.3} parent=0 // pred_check_branch
    %43 = sbr.rel (%p41) target = $region25
  $region24: #{_lambda_.3} parent=0 // pred_region
    %vm44 = vcmask 122880
    %45 = vst.msk [vmem:[#allocation5] sm:$0x1] %vm44, -inf
    %46 = vst.msk [vmem:[#allocation6] sm:$0x1] %vm44, 0.0
    %47 = vst.msk [vmem:[#allocation7] sm:$0x1] %vm44, 0.0
  $region25: #{_lambda_.3} parent=0 // pred_fallthru
    _
  %s48 = sld [smem:[#allocation10]]
  %v49 = vstv %s48
  %v50 = vmul.f32 %v49, 1.442695
  %v51 = vpow.pop %v50
  %s52 = vtos %v51
  %v53 = vld [vmem:[%s1] sm:$0xff]
  %v54 = vld [vmem:[%s1 + $0x8] sm:$0xff]
  %v55 = vpack.c.bf16 %v54, %v53
  %v56 = vld [vmem:[%s19] sm:$0xff]
  %v57 = vld [vmem:[%s19 + $0x8] sm:$0xff]
  %v58 = vpack.c.bf16 %v57, %v56
  %59 = vmatpush.bf16.xpose.msra.mxu0 0
  %60 = vmatpush.bf16.xpose.msra.mxu0 0
  %61 = vmatpush.bf16.xpose.msra.mxu0 0
  %62 = vmatpush.bf16.xpose.msra.mxu0 0
  %63 = vmatpush.bf16.xpose.msra.mxu0 0
  %64 = vmatpush.bf16.xpose.msra.mxu0 0
  %65 = vmatpush.bf16.xpose.msra.mxu0 0
  %66 = vmatpush.bf16.xpose.msra.mxu0 %v58
  %67 = vmatmul.bf16.gmra.mxu0 %v55
  %v68 = vpop.f32.mrf.mxu0
  %v69 = vadd.f32 0.0, %v68
  %v70 = vpop.f32.mrf.mxu0
  %v71 = vadd.f32 0.0, %v70
  %72 = vdwg.mxu0
  %v73 = vstv %s52
  %v74 = vmul.f32 %v69, %v73
  %v75 = vmul.f32 %v71, %v73
  %vm76 = vcmask 130048
  %77 = vst.msk [vmem:[%s3] sm:$0xff] %vm76, %v74
  %78 = vst.msk [vmem:[%s3 + $0x8] sm:$0xff] %vm76, %v75
  %s79 = smul.u32 0, 16
  %v80 = vlaneseq
  %v81 = vshrl.u32 %v80, 7
  %v82 = vadd.s32 %v81, 8
  %v83 = vstv %s79
  %v84 = vadd.s32 %v83, %v81
  %v85 = vadd.s32 %v83, %v82
  %s86 = smul.u32 0, 16
  %v87 = vlaneseq
  %v88 = vand.u32 %v87, 127
  %v89 = vstv %s86
  %v90 = vadd.s32 %v89, %v88
  %vm91 = vcmp.lt.s32.totalorder %v84, 4
  %vm92 = vcmp.lt.s32.totalorder %v85, 4
  %vm93 = vcmp.lt.s32.totalorder %v90, 4
  %vm94 = vmand %vm91, %vm93
  %vm95 = vmand %vm92, %vm93
  %v96 = vsel %vm94, %v74, -1e+30
  %v97 = vsel %vm95, %v75, -1e+30
  %p98 = scmp.eq.s32.totalorder 0, 0
  // Predicated region
  $region26: #{_lambda_.3} parent=0 // pred_check
    %p99 = pneg %p98
  $region27: #{_lambda_.3} parent=0 // pred_check_branch
    %101 = sbr.rel (%p99) target = $region29
  $region28: #{_lambda_.3} parent=0 // pred_region
    %vm102 = vcmp.eq.s32.totalorder %v81, %v88
    %vm103 = vcmp.eq.s32.totalorder %v82, %v88
    %v104 = vsel %vm102, %v74, 0.0
    %v105 = vsel %vm103, %v75, 0.0
    %v106 = vsel %vm76, %v104, 0.0
    %107 = vadd.xlane.f32.xlu0 %v106
    %v108 = vpop.xlane.xlu0 %107
    %v109 = vsel %vm76, %v105, 0.0
    %110 = vadd.xlane.f32.xlu0 %v109
    %v111 = vpop.xlane.xlu0 %110
    %vm112 = vcmask 7168
    %113 = vst.msk [vmem:[#allocation4] sm:$0xff] %vm112, %v108
    %114 = vst.msk [vmem:[#allocation4 + $0x8] sm:$0xff] %vm112, %v111
    %v115 = vadd.f32 %v106, %v109
    %v116 = vrot.slane %v115, 4
    %v117 = vadd.f32 %v115, %v116
    %v118 = vrot.slane %v117, 2
    %v119 = vadd.f32 %v117, %v118
    %v120 = vrot.slane %v119, 1
    %v121 = vadd.f32 %v119, %v120
    %vm122 = vcmask 122880
    %123 = vst.msk [vmem:[#allocation7] sm:$0x1] %vm122, %v121
  $region29: #{_lambda_.3} parent=0 // pred_fallthru
    _
  %v124 = vld [vmem:[#allocation2] sm:$0xff]
  %v125 = vld [vmem:[#allocation2 + $0x8] sm:$0xff]
  %v126 = vsel %vm76, %v96, -inf
  %127 = vmax.xlane.f32.xlu0 %v126
  %v128 = vpop.xlane.xlu0 %127
  %v129 = vsel %vm76, %v97, -inf
  %130 = vmax.xlane.f32.xlu0 %v129
  %v131 = vpop.xlane.xlu0 %130
  %v132 = vmax.f32 %v124, %v128
  %v133 = vmax.f32 %v125, %v131
  %v134 = vsub.f32 %v124, %v132
  %v135 = vsub.f32 %v125, %v133
  %v136 = vmul.f32 %v134, 1.442695
  %v137 = vpow.pop %v136
  %v138 = vmul.f32 %v135, 1.442695
  %v139 = vpow.pop %v138
  %v140 = vld [vmem:[#allocation3] sm:$0xff]
  %v141 = vld [vmem:[#allocation3 + $0x8] sm:$0xff]
  %v142 = vmul.f32 %v137, %v140
  %v143 = vmul.f32 %v139, %v141
  %145 = vset.pattern.permute.xlu0 0
  %146 = vperm.xlu0 %145, %v132
  %v147 = vpop.permute.xlu0 %146
  %150 = vset.pattern.permute.xlu0 0
  %151 = vperm.xlu0 %150, %v133
  %v152 = vpop.permute.xlu0 %151
  %v154 = vsub.f32 %v96, %v147
  %v155 = vsub.f32 %v97, %v152
  %v156 = vmul.f32 %v154, 1.442695
  %v157 = vpow.pop %v156
  %v158 = vmul.f32 %v155, 1.442695
  %v159 = vpow.pop %v158
  %v160 = vsel %vm76, %v157, 0.0
  %161 = vadd.xlane.f32.xlu0 %v160
  %v162 = vpop.xlane.xlu0 %161
  %v163 = vsel %vm76, %v159, 0.0
  %164 = vadd.xlane.f32.xlu0 %v163
  %v165 = vpop.xlane.xlu0 %164
  %v166 = vadd.f32 %v142, %v162
  %v167 = vadd.f32 %v143, %v165
  %vm168 = vcmask 7168
  %169 = vst.msk [vmem:[#allocation3] sm:$0xff] %vm168, %v166
  %170 = vst.msk [vmem:[#allocation3 + $0x8] sm:$0xff] %vm168, %v167
  %171 = vst.msk [vmem:[#allocation2] sm:$0xff] %vm168, %v132
  %172 = vst.msk [vmem:[#allocation2 + $0x8] sm:$0xff] %vm168, %v133
  %v173 = vld [vmem:[#allocation5] sm:$0x1]
  %v174 = vmax.f32 %v126, %v129
  %v175 = vrot.slane %v174, 4
  %v176 = vmax.f32 %v174, %v175
  %v177 = vrot.slane %v176, 2
  %v178 = vmax.f32 %v176, %v177
  %v179 = vrot.slane %v178, 1
  %v180 = vmax.f32 %v178, %v179
  %v181 = vmax.f32 %v173, %v180
  %v182 = vsub.f32 %v173, %v181
  %v183 = vmul.f32 %v182, 1.442695
  %v184 = vpow.pop %v183
  %v185 = vld [vmem:[#allocation6] sm:$0x1]
  %v186 = vmul.f32 %v184, %v185
  %v188 = vperm.slane %v181, 0
  %v190 = vsub.f32 %v96, %v188
  %v191 = vsub.f32 %v97, %v188
  %v192 = vmul.f32 %v190, 1.442695
  %v193 = vpow.pop %v192
  %v194 = vmul.f32 %v191, 1.442695
  %v195 = vpow.pop %v194
  %v196 = vsel %vm76, %v193, 0.0
  %v197 = vsel %vm76, %v195, 0.0
  %v198 = vadd.f32 %v196, %v197
  %v199 = vrot.slane %v198, 4
  %v200 = vadd.f32 %v198, %v199
  %v201 = vrot.slane %v200, 2
  %v202 = vadd.f32 %v200, %v201
  %v203 = vrot.slane %v202, 1
  %v204 = vadd.f32 %v202, %v203
  %v205 = vadd.f32 %v186, %v204
  %vm206 = vcmask 122880
  %207 = vst.msk [vmem:[#allocation6] sm:$0x1] %vm206, %v205
  %208 = vst.msk [vmem:[#allocation5] sm:$0x1] %vm206, %v181
  // Predicated region
  $region30: #{_lambda_.3} parent=0 // pred_check
    %p209 = pneg %p22
  $region31: #{_lambda_.3} parent=0 // pred_check_branch
    %211 = sbr.rel (%p209) target = $region33
  $region32: #{_lambda_.3} parent=0 // pred_region
    %v212 = vld [vmem:[#allocation2] sm:$0xff]
    %v213 = vld [vmem:[#allocation2 + $0x8] sm:$0xff]
    %v214 = vld [vmem:[#allocation3] sm:$0xff]
    %v215 = vld [vmem:[#allocation3 + $0x8] sm:$0xff]
    %v216 = vlog2.pop %v214
    %v217 = vmul.f32 %v216, 0.6931472
    %v218 = vlog2.pop %v215
    %v219 = vmul.f32 %v218, 0.6931472
    %v220 = vadd.f32 %v212, %v217
    %v221 = vadd.f32 %v213, %v219
    %v222 = vld [vmem:[#allocation4] sm:$0xff]
    %v223 = vld [vmem:[#allocation4 + $0x8] sm:$0xff]
    %v224 = vsub.f32 %v220, %v222
    %v225 = vsub.f32 %v221, %v223
    %v226 = vsel %vm91, %v224, 0.0
    %v227 = vsel %vm92, %v225, 0.0
    %v228 = vld [vmem:[#allocation8] sm:$0x1]
    %v229 = vsel %vm168, %v226, 0.0
    %v230 = vsel %vm168, %v227, 0.0
    %v231 = vadd.f32 %v229, %v230
    %v232 = vrot.slane %v231, 4
    %v233 = vadd.f32 %v231, %v232
    %v234 = vrot.slane %v233, 2
    %v235 = vadd.f32 %v233, %v234
    %v236 = vrot.slane %v235, 1
    %v237 = vadd.f32 %v235, %v236
    %v238 = vadd.f32 %v228, %v237
    %vm239 = vcmask 0
    %240 = vst.msk [vmem:[#allocation8] sm:$0x1] %vm239, %v238
  $region33: #{_lambda_.3} parent=0 // pred_fallthru
    _
  // Predicated region
  $region34: #{_lambda_.3} parent=0 // pred_check
    %p241 = pneg %p21
  $region35: #{_lambda_.3} parent=0 // pred_check_branch
    %243 = sbr.rel (%p241) target = $region37
  $region36: #{_lambda_.3} parent=0 // pred_region
    %v244 = vld [vmem:[#allocation5] sm:$0x1]
    %v245 = vld [vmem:[#allocation6] sm:$0x1]
    %v246 = vlog2.pop %v245
    %v247 = vmul.f32 %v246, 0.6931472
    %v248 = vadd.f32 %v244, %v247
    %v249 = vld [vmem:[#allocation7] sm:$0x1]
    %v250 = vsub.f32 %v248, %v249
    %v251 = vsel %vm93, %v250, 0.0
    %v252 = vld [vmem:[#allocation9] sm:$0x1]
    %v253 = vsel %vm206, %v251, 0.0
    %254 = vadd.xlane.f32.xlu0 %v253
    %v255 = vpop.xlane.xlu0 %254
    %v256 = vadd.f32 %v252, %v255
    %vm257 = vcmask 0
    %258 = vst.msk [vmem:[#allocation9] sm:$0x1] %vm257, %v256
  $region37: #{_lambda_.3} parent=0 // pred_fallthru
    _
  // Predicated region
  $region38: #{_lambda_.3} parent=0 // pred_check
    _
  $region39: #{_lambda_.3} parent=0 // pred_check_branch
    %260 = sbr.rel (%p23) target = $region41
  $region40: #{_lambda_.3} parent=0 // pred_region
    %v261 = vld [vmem:[#allocation8] sm:$0x1]
    %v262 = vmul.f32 %v261, 0.25
    %v263 = vld [vmem:[#allocation9] sm:$0x1]
    %v264 = vmul.f32 %v263, 0.25
    %v265 = vadd.f32 %v262, %v264
    %v266 = vmul.f32 %v265, 0.5
    %vm267 = vcmp.eq.s32.totalorder %v88, 0
    %269 = vset.pattern.permute.xlu0 0
    %270 = vperm.xlu0 %269, %v262
    %v271 = vpop.permute.xlu0 %270
    %v273 = vperm.slane %v271, 0
    %v274 = vsel %vm267, %v273, 0.0
    %vm275 = vcmp.eq.s32.totalorder %v88, 1
    %277 = vset.pattern.permute.xlu0 0
    %278 = vperm.xlu0 %277, %v264
    %v279 = vpop.permute.xlu0 %278
    %v281 = vperm.slane %v279, 0
    %v282 = vsel %vm275, %v281, 0.0
    %v283 = vadd.f32 %v274, %v282
    %vm284 = vcmp.eq.s32.totalorder %v88, 2
    %286 = vset.pattern.permute.xlu0 0
    %287 = vperm.xlu0 %286, %v266
    %v288 = vpop.permute.xlu0 %287
    %v290 = vperm.slane %v288, 0
    %v291 = vsel %vm284, %v290, 0.0
    %v292 = vadd.f32 %v283, %v291
    %293 = vst [vmem:[%s4] sm:$0x1] %v292
  $region41: #{_lambda_.3} parent=0 // pred_fallthru
    _
  // Predicated region
  $region42: #{_lambda_.3} parent=0 // pred_check
    _
  $region43: #{_lambda_.3} parent=0 // pred_check_branch
    %295 = sbr.rel (0) target = $region45
  $region44: #{_lambda_.3} parent=0 // pred_region
    _
  $region45: #{_lambda_.3} parent=0 // pred_fallthru
    _
  // Predicated region
  $region46: #{_lambda_.3} parent=0 // pred_check
    _
  $region47: #{_lambda_.3} parent=0 // pred_check_branch
    %297 = sbr.rel (0) target = $region49
  $region48: #{_lambda_.3} parent=0 // pred_region
    _
  $region49: #{_lambda_.3} parent=0 // pred_fallthru
    _
  // Predicated region
  $region50: #{_lambda_.3} parent=0 // pred_check
    _
  $region51: #{_lambda_.3} parent=0 // pred_check_branch
    %299 = sbr.rel (0) target = $region53
  $region52: #{_lambda_.3} parent=0 // pred_region
    _
  $region53: #{_lambda_.3} parent=0 // pred_fallthru
    _
  // Predicated region
  $region54: #{_lambda_.3} parent=0 // pred_check
    _
  $region55: #{_lambda_.3} parent=0 // pred_check_branch
    %301 = sbr.rel (0) target = $region57
  $region56: #{_lambda_.3} parent=0 // pred_region
    _
  $region57: #{_lambda_.3} parent=0 // pred_fallthru
    _

// kernel: _lambda_.2
$region0: #{_lambda_.2}
  #allocation0 [shape = 'u32[]', space=smem, size = 0x4, offset = 0x4, fixed_abs, tag = 'smem constant byte address 0x4 - core index']
  #allocation1 [shape = 'u32[72,128]{1,0:T(1,128)}', space=vmem, size = 0x9000, scoped, tag = 'internal scratch']
  %s0 = inlined_call_operand.vmem [shape: bf16[2,16,128], index: 0, kind: input, shape index: {}]
  %s1 = inlined_call_operand.vmem [shape: bf16[2,128,128], index: 1, kind: input, shape index: {}]
  %s2 = inlined_call_operand.vmem [shape: bf16[2,128,128], index: 2, kind: input, shape index: {}]
  %s3 = inlined_call_operand.vmem [shape: f32[2,16,128], index: 3, kind: output, shape index: {}]
  %s4 = sld [smem:[#allocation0]]
  $region45: #{_lambda_.2} parent=0
    _
  %s6 = ssub.s32 1, %s4
  %s7 = scalar_select 0, %s6, %s4
  loop: start=0, step=1, limit=4
  $region2: #{_lambda_.2} parent=0 // loop_pre_header
    _
  $region3: #{_lambda_.2} parent=0 // loop_header
    %s9 = sphi 0, %s13
    %p10 = scmp.ge.s32.totalorder %s9, 4
    %s19 = sphi 0, %s21
    %s22 = sphi 0, %s19
    %s23 = sphi 0, %s22
    %s39 = sphi 0, %s23
    %s45 = sphi 0, %s47
    %s48 = sphi 0, %s45
    %s49 = sphi 0, %s48
    %s65 = sphi 0, %s49
    %s71 = sphi 0, %s73
    %s74 = sphi 0, %s71
    %s75 = sphi 0, %s74
    %s91 = sphi 0, %s75
    %s97 = sphi 0, %s99
    %s100 = sphi 0, %s97
    %s101 = sphi 0, %s100
    %s117 = sphi 0, %s101
  $region4: #{_lambda_.2} parent=0 // loop_header_branch
    %12 = sbr.rel (%p10) target = $region8
  $region5: #{_lambda_.2} parent=0 // loop_body
    %s14 = ssub.s32 %s9, 1
    %s15 = ssub.s32 %s9, 2
    %s16 = sadd.s32 %s9, 1
    %s17 = ssub.s32 %s9, %s16
    %p18 = scmp.eq.s32.totalorder %s17, 0
    %s20 = sadd.s32 %s19, 1
    %s21 = scalar_select %p18, %s19, %s20
    %p24 = pneg %p18
    %p25 = scmp.eq.s32.totalorder %s9, 1
    %p26 = por %p24, %p25
    %p27 = scmp.ne.s32.totalorder %s19, %s22
    %p28 = scmp.eq.s32.totalorder %s9, 0
    %p29 = por %p27, %p28
    %p30 = scmp.ne.s32.totalorder %s19, %s22
    %p31 = scmp.eq.s32.totalorder %s14, 1
    %p32 = por %p30, %p31
    %p33 = scmp.ne.s32.totalorder %s22, %s23
    %p34 = scmp.eq.s32.totalorder %s14, 0
    %p35 = por %p33, %p34
    %p36 = scmp.ne.s32.totalorder %s22, %s23
    %p37 = scmp.eq.s32.totalorder %s15, 1
    %p38 = por %p36, %p37
    %p40 = scmp.ne.s32.totalorder %s23, %s39
    %p41 = scmp.eq.s32.totalorder %s15, 0
    %p42 = por %p40, %p41
    %s43 = ssub.s32 %s9, %s16
    %p44 = scmp.eq.s32.totalorder %s43, 0
    %s46 = sadd.s32 %s45, 1
    %s47 = scalar_select %p44, %s45, %s46
    %p50 = pneg %p44
    %p51 = scmp.eq.s32.totalorder %s9, 1
    %p52 = por %p50, %p51
    %p53 = scmp.ne.s32.totalorder %s45, %s48
    %p54 = scmp.eq.s32.totalorder %s9, 0
    %p55 = por %p53, %p54
    %p56 = scmp.ne.s32.totalorder %s45, %s48
    %p57 = scmp.eq.s32.totalorder %s14, 1
    %p58 = por %p56, %p57
    %p59 = scmp.ne.s32.totalorder %s48, %s49
    %p60 = scmp.eq.s32.totalorder %s14, 0
    %p61 = por %p59, %p60
    %p62 = scmp.ne.s32.totalorder %s48, %s49
    %p63 = scmp.eq.s32.totalorder %s15, 1
    %p64 = por %p62, %p63
    %p66 = scmp.ne.s32.totalorder %s49, %s65
    %p67 = scmp.eq.s32.totalorder %s15, 0
    %p68 = por %p66, %p67
    %s69 = ssub.s32 %s9, %s16
    %p70 = scmp.eq.s32.totalorder %s69, 0
    %s72 = sadd.s32 %s71, 1
    %s73 = scalar_select %p70, %s71, %s72
    %p76 = pneg %p70
    %p77 = scmp.eq.s32.totalorder %s9, 1
    %p78 = por %p76, %p77
    %p79 = scmp.ne.s32.totalorder %s71, %s74
    %p80 = scmp.eq.s32.totalorder %s9, 0
    %p81 = por %p79, %p80
    %p82 = scmp.ne.s32.totalorder %s71, %s74
    %p83 = scmp.eq.s32.totalorder %s14, 1
    %p84 = por %p82, %p83
    %p85 = scmp.ne.s32.totalorder %s74, %s75
    %p86 = scmp.eq.s32.totalorder %s14, 0
    %p87 = por %p85, %p86
    %p88 = scmp.ne.s32.totalorder %s74, %s75
    %p89 = scmp.eq.s32.totalorder %s15, 1
    %p90 = por %p88, %p89
    %p92 = scmp.ne.s32.totalorder %s75, %s91
    %p93 = scmp.eq.s32.totalorder %s15, 0
    %p94 = por %p92, %p93
    %s95 = ssub.s32 %s9, %s16
    %p96 = scmp.eq.s32.totalorder %s95, 0
    %s98 = sadd.s32 %s97, 1
    %s99 = scalar_select %p96, %s97, %s98
    %p102 = pneg %p96
    %p103 = scmp.eq.s32.totalorder %s9, 1
    %p104 = por %p102, %p103
    %p105 = scmp.ne.s32.totalorder %s97, %s100
    %p106 = scmp.eq.s32.totalorder %s9, 0
    %p107 = por %p105, %p106
    %p108 = scmp.ne.s32.totalorder %s97, %s100
    %p109 = scmp.eq.s32.totalorder %s14, 1
    %p110 = por %p108, %p109
    %p111 = scmp.ne.s32.totalorder %s100, %s101
    %p112 = scmp.eq.s32.totalorder %s14, 0
    %p113 = por %p111, %p112
    %p114 = scmp.ne.s32.totalorder %s100, %s101
    %p115 = scmp.eq.s32.totalorder %s15, 1
    %p116 = por %p114, %p115
    %p118 = scmp.ne.s32.totalorder %s101, %s117
    %p119 = scmp.eq.s32.totalorder %s15, 0
    %p120 = por %p118, %p119
    %p121 = scmp.le.s32.totalorder 1, %s9
    %p122 = scmp.lt.s32.totalorder %s9, 3
    %p123 = pnand %p121, %p122
    %p124 = pneg %p123
    // Predicated region
    $region9: #{_lambda_.2} parent=5 // pred_check
      _
    $region10: #{_lambda_.2} parent=5 // pred_check_branch
      %126 = sbr.rel (%p123) target = $region12
    $region11: #{_lambda_.2} parent=5 // pred_region
      %s127 = ssub.s32 %s9, 1
    $region12: #{_lambda_.2} parent=5 // pred_fallthru
      _
    %p128 = scmp.lt.s32.totalorder %s9, 2
    // Predicated region
    $region13: #{_lambda_.2} parent=5 // pred_check
      %p129 = pneg %p128
    $region14: #{_lambda_.2} parent=5 // pred_check_branch
      %131 = sbr.rel (%p129) target = $region16
    $region15: #{_lambda_.2} parent=5 // pred_region
      // Predicated region
      $region17: #{_lambda_.2} parent=15 // pred_check
        %p132 = pneg %p29
      $region18: #{_lambda_.2} parent=15 // pred_check_branch
        %134 = sbr.rel (%p132) target = $region20
      $region19: #{_lambda_.2} parent=15 // pred_region
        %p135 = scmp.lt.s32.totalorder %s9, 1
        %s136 = scalar_select %p135, %s9, 1
        %s137 = smul.addr %s136, 2
        %s138 = smul.addr %s137, 4
        %s139 = scalar_lea.vmem %s0, %s138
      $region20: #{_lambda_.2} parent=15 // pred_fallthru
        _
      // Predicated region
      $region21: #{_lambda_.2} parent=15 // pred_check
        %p140 = pneg %p55
      $region22: #{_lambda_.2} parent=15 // pred_check_branch
        %142 = sbr.rel (%p140) target = $region24
      $region23: #{_lambda_.2} parent=15 // pred_region
        %p143 = scmp.lt.s32.totalorder %s9, 1
        %s144 = scalar_select %p143, %s9, 1
        %s145 = smul.addr %s144, 16
        %s146 = smul.addr %s145, 4
        %s147 = scalar_lea.vmem %s1, %s146
      $region24: #{_lambda_.2} parent=15 // pred_fallthru
        _
      // Predicated region
      $region25: #{_lambda_.2} parent=15 // pred_check
        %p148 = pneg %p81
      $region26: #{_lambda_.2} parent=15 // pred_check_branch
        %150 = sbr.rel (%p148) target = $region28
      $region27: #{_lambda_.2} parent=15 // pred_region
        %p151 = scmp.lt.s32.totalorder %s9, 1
        %s152 = scalar_select %p151, %s9, 1
        %s153 = smul.addr %s152, 16
        %s154 = smul.addr %s153, 4
        %s155 = scalar_lea.vmem %s2, %s154
      $region28: #{_lambda_.2} parent=15 // pred_fallthru
        _
    $region16: #{_lambda_.2} parent=5 // pred_fallthru
      _
    %p156 = scmp.le.s32.totalorder 1, %s9
    %p157 = scmp.lt.s32.totalorder %s9, 3
    %p158 = pnand %p156, %p157
    %p159 = pneg %p158
    // Predicated region
    $region29: #{_lambda_.2} parent=5 // pred_check
      _
    $region30: #{_lambda_.2} parent=5 // pred_check_branch
      %161 = sbr.rel (%p158) target = $region32
    $region31: #{_lambda_.2} parent=5 // pred_region
      %s162 = ssub.s32 %s9, 1
      %p163 = scmp.lt.s32.totalorder %s14, 1
      %s164 = scalar_select %p163, %s14, 1
      %s165 = smul.addr %s164, 2
      %s166 = smul.addr %s165, 4
      %s167 = scalar_lea.vmem %s0, %s166
      %p168 = pneg %p35
      %p169 = pneg %p32
      %p170 = scmp.lt.s32.totalorder %s14, 1
      %s171 = scalar_select %p170, %s14, 1
      %s172 = smul.addr %s171, 16
      %s173 = smul.addr %s172, 4
      %s174 = scalar_lea.vmem %s1, %s173
      %p175 = pneg %p61
      %p176 = pneg %p58
      %p177 = scmp.lt.s32.totalorder %s14, 1
      %s178 = scalar_select %p177, %s14, 1
      %s179 = smul.addr %s178, 16
      %s180 = smul.addr %s179, 4
      %s181 = scalar_lea.vmem %s2, %s180
      %p182 = pneg %p87
      %p183 = pneg %p84
      %p184 = pneg %p113
      %p185 = pneg %p110
      %p186 = scmp.lt.s32.totalorder %s14, 1
      %s187 = scalar_select %p186, %s14, 1
      %s188 = smul.addr %s187, 2
      %s189 = smul.addr %s188, 8
      %s190 = scalar_lea.vmem %s3, %s189
      %p191 = scmp.lt.s32.totalorder %s14, 1
      %s192 = scalar_select %p191, %s14, 1
      %s193 = smul.addr %s192, 2
      %s194 = smul.addr %s193, 4
      %s195 = scalar_lea.vmem %s0, %s194
      %p196 = scmp.lt.s32.totalorder %s14, 1
      %s197 = scalar_select %p196, %s14, 1
      %s198 = smul.addr %s197, 16
      %s199 = smul.addr %s198, 4
      %s200 = scalar_lea.vmem %s1, %s199
      %p201 = scmp.lt.s32.totalorder %s14, 1
      %s202 = scalar_select %p201, %s14, 1
      %s203 = smul.addr %s202, 16
      %s204 = smul.addr %s203, 4
      %s205 = scalar_lea.vmem %s2, %s204
      %p206 = scmp.lt.s32.totalorder %s14, 1
      %s207 = scalar_select %p206, %s14, 1
      %s208 = smul.addr %s207, 2
      %s209 = smul.addr %s208, 8
      %s210 = scalar_lea.vmem %s3, %s209
      %v211 = vld [vmem:[%s195] sm:$0xf]
      %v212 = vld [vmem:[%s195 + $0x4] sm:$0xf]
      %v213 = vld [vmem:[%s200] sm:$0xf]
      %v214 = vld [vmem:[%s200 + $0x4] sm:$0xf]
      %v215 = vld [vmem:[%s200 + $0x8] sm:$0xf]
      %v216 = vld [vmem:[%s200 + $0xc] sm:$0xf]
      %v217 = vld [vmem:[%s200 + $0x10] sm:$0xf]
      %v218 = vld [vmem:[%s200 + $0x14] sm:$0xf]
      %v219 = vld [vmem:[%s200 + $0x18] sm:$0xf]
      %v220 = vld [vmem:[%s200 + $0x1c] sm:$0xf]
      %v221 = vld [vmem:[%s200 + $0x20] sm:$0xf]
      %v222 = vld [vmem:[%s200 + $0x24] sm:$0xf]
      %v223 = vld [vmem:[%s200 + $0x28] sm:$0xf]
      %v224 = vld [vmem:[%s200 + $0x2c] sm:$0xf]
      %v225 = vld [vmem:[%s200 + $0x30] sm:$0xf]
      %v226 = vld [vmem:[%s200 + $0x34] sm:$0xf]
      %v227 = vld [vmem:[%s200 + $0x38] sm:$0xf]
      %v228 = vld [vmem:[%s200 + $0x3c] sm:$0xf]
      %v231 = vunpack.c.l.b16 %v211
      %v232 = vunpack.c.l.b16 %v212
      %v233 = vpack.c.b16 %v232, %v231
      %v251 = vunpack.c.l.b16 %v213
      %v252 = vunpack.c.l.b16 %v214
      %v253 = vunpack.c.l.b16 %v215
      %v254 = vunpack.c.l.b16 %v216
      %v255 = vunpack.c.l.b16 %v217
      %v256 = vunpack.c.l.b16 %v218
      %v257 = vunpack.c.l.b16 %v219
      %v258 = vunpack.c.l.b16 %v220
      %v259 = vunpack.c.l.b16 %v221
      %v260 = vunpack.c.l.b16 %v222
      %v261 = vunpack.c.l.b16 %v223
      %v262 = vunpack.c.l.b16 %v224
      %v263 = vunpack.c.l.b16 %v225
      %v264 = vunpack.c.l.b16 %v226
      %v265 = vunpack.c.l.b16 %v227
      %v266 = vunpack.c.l.b16 %v228
      %v267 = vpack.c.b16 %v252, %v251
      %v268 = vpack.c.b16 %v254, %v253
      %v269 = vpack.c.b16 %v256, %v255
      %v270 = vpack.c.b16 %v258, %v257
      %v271 = vpack.c.b16 %v260, %v259
      %v272 = vpack.c.b16 %v262, %v261
      %v273 = vpack.c.b16 %v264, %v263
      %v274 = vpack.c.b16 %v266, %v265
      %283 = vmatpush.bf16.msra.mxu0 %v274
      %284 = vmatpush.bf16.msra.mxu0 %v273
      %285 = vmatpush.bf16.msra.mxu0 %v272
      %286 = vmatpush.bf16.msra.mxu0 %v271
      %287 = vmatpush.bf16.msra.mxu0 %v270
      %288 = vmatpush.bf16.msra.mxu0 %v269
      %289 = vmatpush.bf16.msra.mxu0 %v268
      %290 = vmatpush.bf16.msra.mxu0 %v267
      %291 = vmatmul.bf16.gmra.mxu0 %v233
      %v292 = vpop.f32.mrf.mxu0
      %v293 = vadd.f32 0.0, %v292
      %v294 = vpop.f32.mrf.mxu0
      %v295 = vadd.f32 0.0, %v294
      %296 = vdwg.mxu0
      %v297 = vpack.c.bf16 %v295, %v293
      %v298 = vld [vmem:[%s205] sm:$0xf]
      %v299 = vld [vmem:[%s205 + $0x4] sm:$0xf]
      %v300 = vld [vmem:[%s205 + $0x8] sm:$0xf]
      %v301 = vld [vmem:[%s205 + $0xc] sm:$0xf]
      %v302 = vld [vmem:[%s205 + $0x10] sm:$0xf]
      %v303 = vld [vmem:[%s205 + $0x14] sm:$0xf]
      %v304 = vld [vmem:[%s205 + $0x18] sm:$0xf]
      %v305 = vld [vmem:[%s205 + $0x1c] sm:$0xf]
      %v306 = vld [vmem:[%s205 + $0x20] sm:$0xf]
      %v307 = vld [vmem:[%s205 + $0x24] sm:$0xf]
      %v308 = vld [vmem:[%s205 + $0x28] sm:$0xf]
      %v309 = vld [vmem:[%s205 + $0x2c] sm:$0xf]
      %v310 = vld [vmem:[%s205 + $0x30] sm:$0xf]
      %v311 = vld [vmem:[%s205 + $0x34] sm:$0xf]
      %v312 = vld [vmem:[%s205 + $0x38] sm:$0xf]
      %v313 = vld [vmem:[%s205 + $0x3c] sm:$0xf]
      %v330 = vunpack.c.l.b16 %v298
      %v331 = vunpack.c.l.b16 %v299
      %v332 = vunpack.c.l.b16 %v300
      %v333 = vunpack.c.l.b16 %v301
      %v334 = vunpack.c.l.b16 %v302
      %v335 = vunpack.c.l.b16 %v303
      %v336 = vunpack.c.l.b16 %v304
      %v337 = vunpack.c.l.b16 %v305
      %v338 = vunpack.c.l.b16 %v306
      %v339 = vunpack.c.l.b16 %v307
      %v340 = vunpack.c.l.b16 %v308
      %v341 = vunpack.c.l.b16 %v309
      %v342 = vunpack.c.l.b16 %v310
      %v343 = vunpack.c.l.b16 %v311
      %v344 = vunpack.c.l.b16 %v312
      %v345 = vunpack.c.l.b16 %v313
      %v346 = vpack.c.b16 %v331, %v330
      %v347 = vpack.c.b16 %v333, %v332
      %v348 = vpack.c.b16 %v335, %v334
      %v349 = vpack.c.b16 %v337, %v336
      %v350 = vpack.c.b16 %v339, %v338
      %v351 = vpack.c.b16 %v341, %v340
      %v352 = vpack.c.b16 %v343, %v342
      %v353 = vpack.c.b16 %v345, %v344
      %362 = vmatpush.bf16.msra.mxu0 %v353
      %363 = vmatpush.bf16.msra.mxu0 %v352
      %364 = vmatpush.bf16.msra.mxu0 %v351
      %365 = vmatpush.bf16.msra.mxu0 %v350
      %366 = vmatpush.bf16.msra.mxu0 %v349
      %367 = vmatpush.bf16.msra.mxu0 %v348
      %368 = vmatpush.bf16.msra.mxu0 %v347
      %369 = vmatpush.bf16.msra.mxu0 %v346
      %370 = vmatmul.bf16.gmra.mxu0 %v297
      %v371 = vpop.f32.mrf.mxu0
      %v372 = vadd.f32 0.0, %v371
      %v373 = vpop.f32.mrf.mxu0
      %v374 = vadd.f32 0.0, %v373
      %375 = vdwg.mxu0
      %v376 = vmul.f32 %v372, %v372
      %v377 = vmul.f32 %v374, %v374
      %378 = vadd.xlane.f32.xlu0 %v376
      %v379 = vpop.xlane.xlu0 %378
      %380 = vadd.xlane.f32.xlu0 %v377
      %v381 = vpop.xlane.xlu0 %380
      %v382 = vmax.f32 %v379, 1e-24
      %v383 = vmax.f32 %v381, 1e-24
      %v384 = vrsqrt.pop %v382
      %v385 = vmul.f32 %v384, %v382
      %v386 = vmul.f32 %v385, %v384
      %v387 = vmul.f32 0.5, %v386
      %v388 = vsub.f32 1.5, %v387
      %v389 = vmul.f32 %v384, %v388
      %vm390 = vweird.f32 %v382
      %vm391 = vweird.f32 %v384
      %vm392 = vmor %vm390, %vm391
      %v393 = vsel %vm392, %v384, %v389
      %v394 = vrsqrt.pop %v383
      %v395 = vmul.f32 %v394, %v383
      %v396 = vmul.f32 %v395, %v394
      %v397 = vmul.f32 0.5, %v396
      %v398 = vsub.f32 1.5, %v397
      %v399 = vmul.f32 %v394, %v398
      %vm400 = vweird.f32 %v383
      %vm401 = vweird.f32 %v394
      %vm402 = vmor %vm400, %vm401
      %v403 = vsel %vm402, %v394, %v399
      %v404 = vmul.f32 %v372, %v393
      %v405 = vmul.f32 %v374, %v403
      %406 = vst [vmem:[%s210] sm:$0xff] %v404
      %407 = vst [vmem:[%s210 + $0x8] sm:$0xff] %v405
      %p408 = scmp.lt.s32.totalorder %s14, 1
      %s409 = scalar_select %p408, %s14, 1
      %s410 = smul.addr %s409, 2
      %s411 = smul.addr %s410, 8
      %s412 = scalar_lea.vmem %s3, %s411
      // Predicated region
      $region33: #{_lambda_.2} parent=31 // pred_check
        %p413 = pneg %p110
      $region34: #{_lambda_.2} parent=31 // pred_check_branch
        %415 = sbr.rel (%p413) target = $region36
      $region35: #{_lambda_.2} parent=31 // pred_region
        _
      $region36: #{_lambda_.2} parent=31 // pred_fallthru
        _
    $region32: #{_lambda_.2} parent=5 // pred_fallthru
      _
    %p416 = scmp.le.s32.totalorder 2, %s9
    // Predicated region
    $region37: #{_lambda_.2} parent=5 // pred_check
      %p417 = pneg %p416
    $region38: #{_lambda_.2} parent=5 // pred_check_branch
      %419 = sbr.rel (%p417) target = $region40
    $region39: #{_lambda_.2} parent=5 // pred_region
      %s420 = ssub.s32 %s9, 2
      // Predicated region
      $region41: #{_lambda_.2} parent=39 // pred_check
        %p421 = pneg %p116
      $region42: #{_lambda_.2} parent=39 // pred_check_branch
        %423 = sbr.rel (%p421) target = $region44
      $region43: #{_lambda_.2} parent=39 // pred_region
        %p424 = scmp.lt.s32.totalorder %s15, 1
        %s425 = scalar_select %p424, %s15, 1
        %s426 = smul.addr %s425, 2
        %s427 = smul.addr %s426, 8
        %s428 = scalar_lea.vmem %s3, %s427
      $region44: #{_lambda_.2} parent=39 // pred_fallthru
        _
    $region40: #{_lambda_.2} parent=5 // pred_fallthru
      _
  $region6: #{_lambda_.2} parent=0 // loop_footer
    %s13 = sadd.s32 1, %s9
  $region7: #{_lambda_.2} parent=0 // loop_footer_branch
    %8 = sbr.rel target = $region3
  $region8: #{_lambda_.2} parent=0 // loop_exit
    _

</llo_original>
